<compile_context>
chip_gen: v6e
topology: v6e:2x2x1
jax: 0.10.0
libtpu: 0.0.40
codegen_flags: <defaults>
</compile_context>

<pallas_src>
import numpy as np
import jax
import jax.numpy as jnp
from jax.experimental import pallas as pl
from jax.experimental.pallas import tpu as pltpu


# ----------------------------------------------------------------------------
# Init-time construction of kernel-ready constant matrices (host side, one-off).
# ----------------------------------------------------------------------------
def _conv_toeplitz(w, b, L_in, L_out, row_index=None):
    """Dense Toeplitz matrix turning a Conv1d (padding=(K-1)//2) into one matmul:
        y_flat[b, co*L_out + lo] = sum_row x_flat[b, row] * T[row, co*L_out + lo]
    w: (C_out, C_in, K) in PyTorch Conv1d layout.
    row_index(ci, li) -> column of x_flat holding channel ci, position li
    (lets us fold the branch-2 input transpose into the matrix)."""
    w = np.asarray(w, np.float32)
    b = np.asarray(b, np.float32)
    C_out, C_in, K = w.shape
    assert K % 2 == 1, "padding=(K-1)//2 only reproduces same-length conv for odd K"
    P = (K - 1) // 2
    if row_index is None:
        row_index = lambda ci, li: ci * L_in + li
    T = np.zeros((C_in * L_in, C_out * L_out), np.float32)
    for co in range(C_out):
        for ci in range(C_in):
            for lo in range(L_out):
                for k in range(K):
                    li = lo + k - P
                    if 0 <= li < L_in:
                        T[row_index(ci, li), co * L_out + lo] = w[co, ci, k]
    return T, np.repeat(b, L_out)


# ----------------------------------------------------------------------------
# Raw parameter init (deterministic, PyTorch-style uniform bounds).
# ----------------------------------------------------------------------------
def _uniform(key, shape, bound):
    return jax.random.uniform(key, shape, jnp.float32, -bound, bound)


def init_params(key, in_dim, hid_dim, k1, out_dim, k2, max_len, sub_dim, last_hid):
    keys = jax.random.split(key, 18)
    p = {}

    def conv_p(kw, kb, c_out, c_in, k):
        bound = 1.0 / (c_in * k) ** 0.5
        return _uniform(kw, (c_out, c_in, k), bound), _uniform(kb, (c_out,), bound)

    def lin_p(kw, kb, d_out, d_in):
        bound = 1.0 / d_in ** 0.5
        return _uniform(kw, (d_out, d_in), bound), _uniform(kb, (d_out,), bound)

    p["conv1_w"], p["conv1_b"] = conv_p(keys[0], keys[1], hid_dim, max_len, k1)
    p["conv2_w"], p["conv2_b"] = conv_p(keys[2], keys[3], hid_dim, in_dim, k1)
    p["conv2_1_w"], p["conv2_1_b"] = conv_p(keys[4], keys[5], out_dim, hid_dim, k2)
    p["conv2_2_w"], p["conv2_2_b"] = conv_p(keys[6], keys[7], hid_dim, hid_dim, k2)
    p["conv3_w"], p["conv3_b"] = conv_p(keys[8], keys[9], out_dim, hid_dim, k2)
    p["fc_early_w"], p["fc_early_b"] = lin_p(keys[10], keys[11], 1,
                                             max_len * hid_dim + sub_dim)
    p["fc_1_w"], p["fc_1_b"] = lin_p(keys[12], keys[13], last_hid,
                                     (in_dim + max_len) * out_dim + sub_dim)
    p["fc_2_w"], p["fc_2_b"] = lin_p(keys[14], keys[15], last_hid, last_hid)
    p["fc_3_w"], p["fc_3_b"] = lin_p(keys[16], keys[17], 1, last_hid)
    p["norm1_g"] = jnp.ones((max_len,), jnp.float32)
    p["norm1_b"] = jnp.zeros((max_len,), jnp.float32)
    p["norm2_g"] = jnp.ones((in_dim,), jnp.float32)
    p["norm2_b"] = jnp.zeros((in_dim,), jnp.float32)
    return p


_PARAM_ORDER = (
    "m12", "g1", "be1", "g2", "be2",   # fused BN constants (both branches)
    "t1", "tb1", "t21", "tb21",        # branch 1 convs
    "t2", "tb2", "t22", "tb22",        # branch 2 convs
    "t3e", "tb3e",                     # conv3 || fc_early(h2-part)   (same-LHS fusion)
    "ws",                              # fc_1(sub) || fc_early(sub)   (same-LHS fusion)
    "w1a", "w1b", "bf1",               # fc_1 (split at init-time concat boundaries)
    "w2", "bf2", "w3", "bf3",          # fc_2 / fc_3
)


def prepare_kernel_params(p, in_dim, hid_dim, out_dim, max_len, sub_dim, last_hid):
    """Repack PyTorch-layout params into kernel-ready constants (done once).
    Matmul operands are stored bf16 (single-pass MXU, half the weight DMA);
    bias / gamma / beta rows stay f32 (element-wise path stays f32)."""
    kp = {}
    F = max_len * in_dim  # flattened enc_inputs: column = m*in_dim + d

    def w_bf16(a):
        return jnp.asarray(np.asarray(a, np.float32), jnp.bfloat16)

    def f32row(a):
        return jnp.asarray(np.asarray(a, np.float32).reshape(1, -1))

    # --- BatchNorm: ONE fused per-channel averaging matrix [m1 | m2]  (F, 2F) ---
    # Branch 1: channels = max_len (col // in_dim).  Branch 2: channels = in_dim
    # (col % in_dim) -- the enc.transpose(1,2) is folded into this column mapping.
    ch1 = np.arange(F) // in_dim
    ch2 = np.arange(F) % in_dim
    m1 = (ch1[:, None] == ch1[None, :]).astype(np.float32) / float(in_dim)
    m2 = (ch2[:, None] == ch2[None, :]).astype(np.float32) / float(max_len)
    kp["m12"] = w_bf16(np.concatenate([m1, m2], axis=1))     # 1/in_dim, 1/max_len exact in bf16
    kp["g1"] = f32row(np.asarray(p["norm1_g"], np.float32)[ch1])
    kp["be1"] = f32row(np.asarray(p["norm1_b"], np.float32)[ch1])
    kp["g2"] = f32row(np.asarray(p["norm2_g"], np.float32)[ch2])
    kp["be2"] = f32row(np.asarray(p["norm2_b"], np.float32)[ch2])

    # --- conv layers as dense Toeplitz matmuls on the flattened (B, C*L) slab ---
    t1, tb1 = _conv_toeplitz(p["conv1_w"], p["conv1_b"], in_dim, in_dim)
    t21, tb21 = _conv_toeplitz(p["conv2_1_w"], p["conv2_1_b"], in_dim, in_dim)
    t2, tb2 = _conv_toeplitz(p["conv2_w"], p["conv2_b"], max_len, max_len,
                             row_index=lambda ci, li: li * in_dim + ci)
    t22, tb22 = _conv_toeplitz(p["conv2_2_w"], p["conv2_2_b"], max_len, max_len)
    t3, tb3 = _conv_toeplitz(p["conv3_w"], p["conv3_b"], max_len, max_len)
    kp["t1"], kp["tb1"] = w_bf16(t1), f32row(tb1)
    kp["t21"], kp["tb21"] = w_bf16(t21), f32row(tb21)
    kp["t2"], kp["tb2"] = w_bf16(t2), f32row(tb2)
    kp["t22"], kp["tb22"] = w_bf16(t22), f32row(tb22)

    # --- conv3 and fc_early's h2-partial share LHS h2 -> one (hid*max_len, 65) dot ---
    we = np.asarray(p["fc_early_w"], np.float32)              # (1, hid*max_len + sub)
    hm = hid_dim * max_len
    kp["t3e"] = w_bf16(np.concatenate([t3, we[:, :hm].T], axis=1))
    kp["tb3e"] = f32row(np.concatenate([tb3, np.asarray(p["fc_early_b"], np.float32)]))

    # --- fc_1 split at the init-time concat boundaries; fc_1 / fc_early substrate
    #     partials share LHS `substrate` -> one (sub_dim, last_hid + 1) dot.
    w1 = np.asarray(p["fc_1_w"], np.float32)
    n_a, n_b = out_dim * in_dim, out_dim * max_len
    kp["w1a"] = w_bf16(w1[:, :n_a].T)
    kp["w1b"] = w_bf16(w1[:, n_a:n_a + n_b].T)
    kp["ws"] = w_bf16(np.concatenate([w1[:, n_a + n_b:].T, we[:, hm:].T], axis=1))
    kp["bf1"] = f32row(p["fc_1_b"])
    kp["w2"], kp["bf2"] = w_bf16(np.asarray(p["fc_2_w"], np.float32).T), f32row(p["fc_2_b"])
    kp["w3"], kp["bf3"] = w_bf16(np.asarray(p["fc_3_w"], np.float32).T), f32row(p["fc_3_b"])
    return kp


# ----------------------------------------------------------------------------
# The single fused forward kernel (one invocation, everything VMEM-resident).
# ----------------------------------------------------------------------------
def _fused_forward_kernel(
        x_ref, sub_ref,
        m12_ref, g1_ref, be1_ref, g2_ref, be2_ref,
        t1_ref, tb1_ref, t21_ref, tb21_ref,
        t2_ref, tb2_ref, t22_ref, tb22_ref,
        t3e_ref, tb3e_ref, ws_ref,
        w1a_ref, w1b_ref, bf1_ref,
        w2_ref, bf2_ref, w3_ref, bf3_ref,
        out_ref):
    f32, bf16 = jnp.float32, jnp.bfloat16
    x = x_ref[...].astype(f32)            # (B, F)  flattened enc_inputs
    sub = sub_ref[...].astype(f32)        # (B, sub_dim)
    B, F = x.shape

    def mxu(a, w_ref):
        # single-pass bf16 MXU matmul (weights pre-stored bf16), f32 accumulation
        return jnp.dot(a.astype(bf16), w_ref[...], preferred_element_type=f32)

    # ---- BatchNorm batch statistics for BOTH branches: one fused dot ----------
    # (training-mode batch stats, biased variance, eps=1e-5)
    mu = jnp.mean(x, axis=0, keepdims=True)            # (1, F)
    e2 = jnp.mean(x * x, axis=0, keepdims=True)        # (1, F)
    r2 = jax.lax.broadcasted_iota(jnp.int32, (2, F), 0)
    stats = mxu(jnp.where(r2 == 0, mu, e2), m12_ref)   # (2, 2F): rows = [mean, E[x^2]]
    mean1, ex2_1 = stats[0:1, :F], stats[1:2, :F]
    mean2, ex2_2 = stats[0:1, F:], stats[1:2, F:]
    inv1 = jax.lax.rsqrt(ex2_1 - mean1 * mean1 + 1e-5)
    inv2 = jax.lax.rsqrt(ex2_2 - mean2 * mean2 + 1e-5)
    h1 = (x - mean1) * (inv1 * g1_ref[...]) + be1_ref[...]   # norm1(enc)
    h2 = (x - mean2) * (inv2 * g2_ref[...]) + be2_ref[...]   # norm2(enc^T), transpose folded

    # ---- branch 1: relu(conv2_1(relu(conv1(.)))) -------------------------------
    h1 = jnp.maximum(mxu(h1, t1_ref) + tb1_ref[...], 0.0)
    a1 = jnp.maximum(mxu(h1, t21_ref) + tb21_ref[...], 0.0)       # flat(output_1)

    # ---- branch 2: relu(conv2_2(relu(conv2(.)))) + residual --------------------
    h2 = jnp.maximum(mxu(h2, t2_ref) + tb2_ref[...], 0.0)
    h2 = jnp.maximum(mxu(h2, t22_ref) + tb22_ref[...], 0.0) + h2   # flat(output_2)

    # ---- substrate partials of fc_1 (cols :last_hid) and fc_early (last col) ---
    subz = mxu(sub, ws_ref)                             # (B, last_hid + 1)
    last_hid = subz.shape[1] - 1

    # ---- conv3 and fc_early's h2-partial share LHS h2: one fused dot -----------
    z = mxu(h2, t3e_ref) + tb3e_ref[...]                # (B, n3 + 1)
    n3 = z.shape[1] - 1
    y3 = jnp.maximum(z[:, :n3], 0.0)                    # flat(relu(conv3(output_2)))
    se = z[:, n3:] + subz[:, last_hid:]                 # fc_early logit
    single = pl.reciprocal(1.0 + jnp.exp(-se), approx=True)   # sigmoid via EUP

    # ---- final MLP (torch.cat folded into split weights) -----------------------
    h = mxu(a1, w1a_ref) + mxu(y3, w1b_ref) + subz[:, :last_hid] + bf1_ref[...]
    h = jnp.maximum(h, 0.0)
    h = jnp.maximum(mxu(h, w2_ref) + bf2_ref[...], 0.0)
    out = mxu(h, w3_ref) + bf3_ref[...]

    # ---- single output slab: lane 0 = out, lane 1 = single_conv ---------------
    c2 = jax.lax.broadcasted_iota(jnp.int32, (B, 2), 1)
    out_ref[...] = jnp.where(c2 == 0, out, single).astype(out_ref.dtype)


def neural_net_forward(kernel_params, enc_inputs, substrate):
    B, max_len, in_dim = enc_inputs.shape
    x_flat = enc_inputs.reshape(B, max_len * in_dim)    # free bitcast reshape
    args = [x_flat, substrate] + [kernel_params[k] for k in _PARAM_ORDER]

    # No grid: single invocation, whole arrays VMEM-resident, no double-buffering.
    slab = pl.pallas_call(
        _fused_forward_kernel,
        out_shape=jax.ShapeDtypeStruct((B, 2), enc_inputs.dtype),
        in_specs=[pl.BlockSpec(memory_space=pltpu.MemorySpace.VMEM) for _ in args],
        out_specs=pl.BlockSpec(memory_space=pltpu.MemorySpace.VMEM),
    )(*args)
    return slab[:, 0:1], slab[:, 1:2]


# ----------------------------------------------------------------------------
# Plain-JAX reference of the PyTorch forward (correctness cross-check only).
# Reference matmuls request HIGHEST precision explicitly (kernel is unaffected).
# ----------------------------------------------------------------------------
_HI = jax.lax.Precision.HIGHEST


def _ref_conv1d(x, w, b):
    B, C_in, L = x.shape
    C_out, _, K = w.shape
    P = (K - 1) // 2
    xp = jnp.pad(x, ((0, 0), (0, 0), (P, P)))
    y = jnp.zeros((B, C_out, L), jnp.float32)
    for k in range(K):
        y = y + jnp.einsum('oi,bil->bol', w[:, :, k], xp[:, :, k:k + L], precision=_HI)
    return y + b[None, :, None]


def _ref_bn(x, g, bt):
    mean = jnp.mean(x, axis=(0, 2), keepdims=True)
    var = jnp.mean((x - mean) ** 2, axis=(0, 2), keepdims=True)
    return (x - mean) * jax.lax.rsqrt(var + 1e-5) * g[None, :, None] + bt[None, :, None]


def reference_forward(p, enc, sub):
    B = enc.shape[0]
    x1 = _ref_bn(enc, p["norm1_g"], p["norm1_b"])
    x1 = jax.nn.relu(_ref_conv1d(x1, p["conv1_w"], p["conv1_b"]))
    x1 = jax.nn.relu(_ref_conv1d(x1, p["conv2_1_w"], p["conv2_1_b"]))
    x2 = jnp.transpose(enc, (0, 2, 1))
    x2 = _ref_bn(x2, p["norm2_g"], p["norm2_b"])
    x2 = jax.nn.relu(_ref_conv1d(x2, p["conv2_w"], p["conv2_b"]))
    x2 = jax.nn.relu(_ref_conv1d(x2, p["conv2_2_w"], p["conv2_2_b"])) + x2
    single = jnp.concatenate([x2.reshape(B, -1), sub], axis=1)
    single = jax.nn.sigmoid(jnp.dot(single, p["fc_early_w"].T, precision=_HI)
                            + p["fc_early_b"])
    x2 = jax.nn.relu(_ref_conv1d(x2, p["conv3_w"], p["conv3_b"]))
    out = jnp.concatenate([x1.reshape(B, -1), x2.reshape(B, -1), sub], axis=1)
    out = jax.nn.relu(jnp.dot(out, p["fc_1_w"].T, precision=_HI) + p["fc_1_b"])
    out = jax.nn.relu(jnp.dot(out, p["fc_2_w"].T, precision=_HI) + p["fc_2_b"])
    out = jnp.dot(out, p["fc_3_w"].T, precision=_HI) + p["fc_3_b"]
    return out, single


if __name__ == "__main__":
    B = 2
    in_dim, hid_dim, kernel_1 = 16, 32, 3
    out_dim, kernel_2 = 8, 3
    max_len, sub_dim, last_hid = 8, 4, 32

    key = jax.random.PRNGKey(0)
    kparam_key, kx, ks = jax.random.split(key, 3)
    raw_params = init_params(kparam_key, in_dim, hid_dim, kernel_1, out_dim,
                             kernel_2, max_len, sub_dim, last_hid)
    kernel_params = prepare_kernel_params(raw_params, in_dim, hid_dim, out_dim,
                                          max_len, sub_dim, last_hid)
    enc_inputs = jax.random.normal(kx, (B, max_len, in_dim), jnp.float32)
    substrate = jax.random.normal(ks, (B, sub_dim), jnp.float32)

    fwd = jax.jit(neural_net_forward)
    out, single_conv = fwd(kernel_params, enc_inputs, substrate)
    jax.block_until_ready((out, single_conv))

    out_ref, single_ref = jax.jit(reference_forward)(raw_params, enc_inputs, substrate)
    jax.block_until_ready((out_ref, single_ref))

    assert out.shape == (B, 1), out.shape
    assert single_conv.shape == (B, 1), single_conv.shape
    assert bool(jnp.all(jnp.isfinite(out))) and bool(jnp.all(jnp.isfinite(single_conv)))
    # bf16 weights / bf16 dot operands with f32 accumulation -> tolerances relaxed
    # slightly vs. the old all-f32-highest kernel (review correctness note).
    assert bool(jnp.allclose(out, out_ref, atol=4e-2, rtol=4e-2)), (out, out_ref)
    assert bool(jnp.allclose(single_conv, single_ref, atol=2e-2, rtol=2e-2)), \
        (single_conv, single_ref)
    print("KERNEL_OK")
</pallas_src>

<mosaic_0001>
module attributes {stable_mosaic.version = 11 : i64} {
  func.func @_fused_forward_kernel(%arg0: memref<2x128xf32, #tpu.memory_space<vmem>>, %arg1: memref<2x4xf32, #tpu.memory_space<vmem>>, %arg2: memref<128x256xbf16, #tpu.memory_space<vmem>>, %arg3: memref<1x128xf32, #tpu.memory_space<vmem>>, %arg4: memref<1x128xf32, #tpu.memory_space<vmem>>, %arg5: memref<1x128xf32, #tpu.memory_space<vmem>>, %arg6: memref<1x128xf32, #tpu.memory_space<vmem>>, %arg7: memref<128x512xbf16, #tpu.memory_space<vmem>>, %arg8: memref<1x512xf32, #tpu.memory_space<vmem>>, %arg9: memref<512x128xbf16, #tpu.memory_space<vmem>>, %arg10: memref<1x128xf32, #tpu.memory_space<vmem>>, %arg11: memref<128x256xbf16, #tpu.memory_space<vmem>>, %arg12: memref<1x256xf32, #tpu.memory_space<vmem>>, %arg13: memref<256x256xbf16, #tpu.memory_space<vmem>>, %arg14: memref<1x256xf32, #tpu.memory_space<vmem>>, %arg15: memref<256x65xbf16, #tpu.memory_space<vmem>>, %arg16: memref<1x65xf32, #tpu.memory_space<vmem>>, %arg17: memref<4x33xbf16, #tpu.memory_space<vmem>>, %arg18: memref<128x32xbf16, #tpu.memory_space<vmem>>, %arg19: memref<64x32xbf16, #tpu.memory_space<vmem>>, %arg20: memref<1x32xf32, #tpu.memory_space<vmem>>, %arg21: memref<32x32xbf16, #tpu.memory_space<vmem>>, %arg22: memref<1x32xf32, #tpu.memory_space<vmem>>, %arg23: memref<32x1xbf16, #tpu.memory_space<vmem>>, %arg24: memref<1x1xf32, #tpu.memory_space<vmem>>, %arg25: memref<2x2xf32, #tpu.memory_space<vmem>>) attributes {dimension_semantics = [], scalar_prefetch = 0 : i64, scratch_operands = 0 : i64, tpu.core_type = #tpu.core_type<tc>} {
    %c0 = arith.constant 0 : index
    %c0_0 = arith.constant 0 : index
    %0 = vector.load %arg0[%c0, %c0_0] : memref<2x128xf32, #tpu.memory_space<vmem>>, vector<2x128xf32>
    %c0_1 = arith.constant 0 : index
    %c0_2 = arith.constant 0 : index
    %1 = vector.load %arg1[%c0_1, %c0_2] : memref<2x4xf32, #tpu.memory_space<vmem>>, vector<2x4xf32>
    %cst = arith.constant dense<0.000000e+00> : vector<128xf32>
    %2 = vector.multi_reduction <add>, %0, %cst [0] : vector<2x128xf32> to vector<128xf32>
    %3 = vector.shape_cast %2 : vector<128xf32> to vector<1x128xf32>
    %cst_3 = arith.constant 2.000000e+00 : f32
    %4 = vector.broadcast %cst_3 : f32 to vector<1x128xf32>
    %5 = arith.divf %3, %4 : vector<1x128xf32>
    %6 = arith.mulf %0, %0 : vector<2x128xf32>
    %cst_4 = arith.constant dense<0.000000e+00> : vector<128xf32>
    %7 = vector.multi_reduction <add>, %6, %cst_4 [0] : vector<2x128xf32> to vector<128xf32>
    %8 = vector.shape_cast %7 : vector<128xf32> to vector<1x128xf32>
    %cst_5 = arith.constant 2.000000e+00 : f32
    %9 = vector.broadcast %cst_5 : f32 to vector<1x128xf32>
    %10 = arith.divf %8, %9 : vector<1x128xf32>
    %11 = tpu.iota {dimensions = array<i32: 0>} : vector<2x128xi32>
    %c0_i32 = arith.constant 0 : i32
    %12 = vector.broadcast %c0_i32 : i32 to vector<2x128xi32>
    %13 = arith.cmpi eq, %11, %12 : vector<2x128xi32>
    %14 = vector.shape_cast %5 : vector<1x128xf32> to vector<1x128xf32>
    %15 = vector.broadcast %14 : vector<1x128xf32> to vector<2x128xf32>
    %16 = vector.shape_cast %10 : vector<1x128xf32> to vector<1x128xf32>
    %17 = vector.broadcast %16 : vector<1x128xf32> to vector<2x128xf32>
    %18 = arith.select %13, %15, %17 : vector<2x128xi1>, vector<2x128xf32>
    %19 = arith.truncf %18 : vector<2x128xf32> to vector<2x128xbf16>
    %c0_6 = arith.constant 0 : index
    %c0_7 = arith.constant 0 : index
    %20 = vector.load %arg2[%c0_6, %c0_7] : memref<128x256xbf16, #tpu.memory_space<vmem>>, vector<128x256xbf16>
    %cst_8 = arith.constant dense<0.000000e+00> : vector<2x256xf32>
    %21 = tpu.matmul %19, %20, %cst_8 {dimension_numbers = #tpu.dot_dimension_numbers<[1], [0], [0], [1], [0, 0, 1, 1], [], []>} : vector<2x128xbf16>, vector<128x256xbf16>, vector<2x256xf32> -> vector<2x256xf32>
    %22 = vector.extract_strided_slice %21 {offsets = [0, 0], sizes = [1, 128], strides = [1, 1]} : vector<2x256xf32> to vector<1x128xf32>
    %23 = vector.extract_strided_slice %21 {offsets = [1, 0], sizes = [1, 128], strides = [1, 1]} : vector<2x256xf32> to vector<1x128xf32>
    %24 = vector.extract_strided_slice %21 {offsets = [0, 128], sizes = [1, 128], strides = [1, 1]} : vector<2x256xf32> to vector<1x128xf32>
    %25 = vector.extract_strided_slice %21 {offsets = [1, 128], sizes = [1, 128], strides = [1, 1]} : vector<2x256xf32> to vector<1x128xf32>
    %26 = arith.mulf %22, %22 : vector<1x128xf32>
    %27 = arith.subf %23, %26 : vector<1x128xf32>
    %cst_9 = arith.constant 9.99999974E-6 : f32
    %28 = vector.broadcast %cst_9 : f32 to vector<1x128xf32>
    %29 = arith.addf %27, %28 : vector<1x128xf32>
    %30 = math.rsqrt %29 : vector<1x128xf32>
    %31 = arith.mulf %24, %24 : vector<1x128xf32>
    %32 = arith.subf %25, %31 : vector<1x128xf32>
    %cst_10 = arith.constant 9.99999974E-6 : f32
    %33 = vector.broadcast %cst_10 : f32 to vector<1x128xf32>
    %34 = arith.addf %32, %33 : vector<1x128xf32>
    %35 = math.rsqrt %34 : vector<1x128xf32>
    %36 = vector.broadcast %22 : vector<1x128xf32> to vector<2x128xf32>
    %37 = arith.subf %0, %36 : vector<2x128xf32>
    %c0_11 = arith.constant 0 : index
    %c0_12 = arith.constant 0 : index
    %38 = vector.load %arg3[%c0_11, %c0_12] : memref<1x128xf32, #tpu.memory_space<vmem>>, vector<1x128xf32>
    %39 = arith.mulf %30, %38 : vector<1x128xf32>
    %40 = vector.broadcast %39 : vector<1x128xf32> to vector<2x128xf32>
    %41 = arith.mulf %37, %40 : vector<2x128xf32>
    %c0_13 = arith.constant 0 : index
    %c0_14 = arith.constant 0 : index
    %42 = vector.load %arg4[%c0_13, %c0_14] : memref<1x128xf32, #tpu.memory_space<vmem>>, vector<1x128xf32>
    %43 = vector.broadcast %42 : vector<1x128xf32> to vector<2x128xf32>
    %44 = arith.addf %41, %43 : vector<2x128xf32>
    %45 = vector.broadcast %24 : vector<1x128xf32> to vector<2x128xf32>
    %46 = arith.subf %0, %45 : vector<2x128xf32>
    %c0_15 = arith.constant 0 : index
    %c0_16 = arith.constant 0 : index
    %47 = vector.load %arg5[%c0_15, %c0_16] : memref<1x128xf32, #tpu.memory_space<vmem>>, vector<1x128xf32>
    %48 = arith.mulf %35, %47 : vector<1x128xf32>
    %49 = vector.broadcast %48 : vector<1x128xf32> to vector<2x128xf32>
    %50 = arith.mulf %46, %49 : vector<2x128xf32>
    %c0_17 = arith.constant 0 : index
    %c0_18 = arith.constant 0 : index
    %51 = vector.load %arg6[%c0_17, %c0_18] : memref<1x128xf32, #tpu.memory_space<vmem>>, vector<1x128xf32>
    %52 = vector.broadcast %51 : vector<1x128xf32> to vector<2x128xf32>
    %53 = arith.addf %50, %52 : vector<2x128xf32>
    %54 = arith.truncf %44 : vector<2x128xf32> to vector<2x128xbf16>
    %c0_19 = arith.constant 0 : index
    %c0_20 = arith.constant 0 : index
    %55 = vector.load %arg7[%c0_19, %c0_20] : memref<128x512xbf16, #tpu.memory_space<vmem>>, vector<128x512xbf16>
    %cst_21 = arith.constant dense<0.000000e+00> : vector<2x512xf32>
    %56 = tpu.matmul %54, %55, %cst_21 {dimension_numbers = #tpu.dot_dimension_numbers<[1], [0], [0], [1], [0, 0, 1, 1], [], []>} : vector<2x128xbf16>, vector<128x512xbf16>, vector<2x512xf32> -> vector<2x512xf32>
    %c0_22 = arith.constant 0 : index
    %c0_23 = arith.constant 0 : index
    %57 = vector.load %arg8[%c0_22, %c0_23] : memref<1x512xf32, #tpu.memory_space<vmem>>, vector<1x512xf32>
    %58 = vector.broadcast %57 : vector<1x512xf32> to vector<2x512xf32>
    %59 = arith.addf %56, %58 : vector<2x512xf32>
    %cst_24 = arith.constant 0.000000e+00 : f32
    %60 = vector.broadcast %cst_24 : f32 to vector<2x512xf32>
    %61 = arith.maximumf %59, %60 : vector<2x512xf32>
    %62 = arith.truncf %61 : vector<2x512xf32> to vector<2x512xbf16>
    %c0_25 = arith.constant 0 : index
    %c0_26 = arith.constant 0 : index
    %63 = vector.load %arg9[%c0_25, %c0_26] : memref<512x128xbf16, #tpu.memory_space<vmem>>, vector<512x128xbf16>
    %cst_27 = arith.constant dense<0.000000e+00> : vector<2x128xf32>
    %64 = tpu.matmul %62, %63, %cst_27 {dimension_numbers = #tpu.dot_dimension_numbers<[1], [0], [0], [1], [0, 0, 1, 1], [], []>} : vector<2x512xbf16>, vector<512x128xbf16>, vector<2x128xf32> -> vector<2x128xf32>
    %c0_28 = arith.constant 0 : index
    %c0_29 = arith.constant 0 : index
    %65 = vector.load %arg10[%c0_28, %c0_29] : memref<1x128xf32, #tpu.memory_space<vmem>>, vector<1x128xf32>
    %66 = vector.broadcast %65 : vector<1x128xf32> to vector<2x128xf32>
    %67 = arith.addf %64, %66 : vector<2x128xf32>
    %cst_30 = arith.constant 0.000000e+00 : f32
    %68 = vector.broadcast %cst_30 : f32 to vector<2x128xf32>
    %69 = arith.maximumf %67, %68 : vector<2x128xf32>
    %70 = arith.truncf %53 : vector<2x128xf32> to vector<2x128xbf16>
    %c0_31 = arith.constant 0 : index
    %c0_32 = arith.constant 0 : index
    %71 = vector.load %arg11[%c0_31, %c0_32] : memref<128x256xbf16, #tpu.memory_space<vmem>>, vector<128x256xbf16>
    %cst_33 = arith.constant dense<0.000000e+00> : vector<2x256xf32>
    %72 = tpu.matmul %70, %71, %cst_33 {dimension_numbers = #tpu.dot_dimension_numbers<[1], [0], [0], [1], [0, 0, 1, 1], [], []>} : vector<2x128xbf16>, vector<128x256xbf16>, vector<2x256xf32> -> vector<2x256xf32>
    %c0_34 = arith.constant 0 : index
    %c0_35 = arith.constant 0 : index
    %73 = vector.load %arg12[%c0_34, %c0_35] : memref<1x256xf32, #tpu.memory_space<vmem>>, vector<1x256xf32>
    %74 = vector.broadcast %73 : vector<1x256xf32> to vector<2x256xf32>
    %75 = arith.addf %72, %74 : vector<2x256xf32>
    %cst_36 = arith.constant 0.000000e+00 : f32
    %76 = vector.broadcast %cst_36 : f32 to vector<2x256xf32>
    %77 = arith.maximumf %75, %76 : vector<2x256xf32>
    %78 = arith.truncf %77 : vector<2x256xf32> to vector<2x256xbf16>
    %c0_37 = arith.constant 0 : index
    %c0_38 = arith.constant 0 : index
    %79 = vector.load %arg13[%c0_37, %c0_38] : memref<256x256xbf16, #tpu.memory_space<vmem>>, vector<256x256xbf16>
    %cst_39 = arith.constant dense<0.000000e+00> : vector<2x256xf32>
    %80 = tpu.matmul %78, %79, %cst_39 {dimension_numbers = #tpu.dot_dimension_numbers<[1], [0], [0], [1], [0, 0, 1, 1], [], []>} : vector<2x256xbf16>, vector<256x256xbf16>, vector<2x256xf32> -> vector<2x256xf32>
    %c0_40 = arith.constant 0 : index
    %c0_41 = arith.constant 0 : index
    %81 = vector.load %arg14[%c0_40, %c0_41] : memref<1x256xf32, #tpu.memory_space<vmem>>, vector<1x256xf32>
    %82 = vector.broadcast %81 : vector<1x256xf32> to vector<2x256xf32>
    %83 = arith.addf %80, %82 : vector<2x256xf32>
    %cst_42 = arith.constant 0.000000e+00 : f32
    %84 = vector.broadcast %cst_42 : f32 to vector<2x256xf32>
    %85 = arith.maximumf %83, %84 : vector<2x256xf32>
    %86 = arith.addf %85, %77 : vector<2x256xf32>
    %87 = arith.truncf %1 : vector<2x4xf32> to vector<2x4xbf16>
    %c0_43 = arith.constant 0 : index
    %c0_44 = arith.constant 0 : index
    %88 = vector.load %arg17[%c0_43, %c0_44] : memref<4x33xbf16, #tpu.memory_space<vmem>>, vector<4x33xbf16>
    %cst_45 = arith.constant dense<0.000000e+00> : vector<2x33xf32>
    %89 = tpu.matmul %87, %88, %cst_45 {dimension_numbers = #tpu.dot_dimension_numbers<[1], [0], [0], [1], [0, 0, 1, 1], [], []>} : vector<2x4xbf16>, vector<4x33xbf16>, vector<2x33xf32> -> vector<2x33xf32>
    %90 = arith.truncf %86 : vector<2x256xf32> to vector<2x256xbf16>
    %c0_46 = arith.constant 0 : index
    %c0_47 = arith.constant 0 : index
    %91 = vector.load %arg15[%c0_46, %c0_47] : memref<256x65xbf16, #tpu.memory_space<vmem>>, vector<256x65xbf16>
    %cst_48 = arith.constant dense<0.000000e+00> : vector<2x65xf32>
    %92 = tpu.matmul %90, %91, %cst_48 {dimension_numbers = #tpu.dot_dimension_numbers<[1], [0], [0], [1], [0, 0, 1, 1], [], []>} : vector<2x256xbf16>, vector<256x65xbf16>, vector<2x65xf32> -> vector<2x65xf32>
    %c0_49 = arith.constant 0 : index
    %c0_50 = arith.constant 0 : index
    %93 = vector.load %arg16[%c0_49, %c0_50] : memref<1x65xf32, #tpu.memory_space<vmem>>, vector<1x65xf32>
    %94 = vector.broadcast %93 : vector<1x65xf32> to vector<2x65xf32>
    %95 = arith.addf %92, %94 : vector<2x65xf32>
    %96 = vector.extract_strided_slice %95 {offsets = [0, 0], sizes = [2, 64], strides = [1, 1]} : vector<2x65xf32> to vector<2x64xf32>
    %cst_51 = arith.constant 0.000000e+00 : f32
    %97 = vector.broadcast %cst_51 : f32 to vector<2x64xf32>
    %98 = arith.maximumf %96, %97 : vector<2x64xf32>
    %99 = vector.extract_strided_slice %95 {offsets = [0, 64], sizes = [2, 1], strides = [1, 1]} : vector<2x65xf32> to vector<2x1xf32>
    %100 = vector.extract_strided_slice %89 {offsets = [0, 32], sizes = [2, 1], strides = [1, 1]} : vector<2x33xf32> to vector<2x1xf32>
    %101 = arith.addf %99, %100 : vector<2x1xf32>
    %cst_52 = arith.constant 0.000000e+00 : f32
    %102 = vector.broadcast %cst_52 : f32 to vector<2x1xf32>
    %103 = arith.subf %102, %101 : vector<2x1xf32>
    %104 = math.exp %103 : vector<2x1xf32>
    %cst_53 = arith.constant 1.000000e+00 : f32
    %105 = vector.broadcast %cst_53 : f32 to vector<2x1xf32>
    %106 = arith.addf %105, %104 : vector<2x1xf32>
    %107 = tpu.reciprocal %106 {approx = true} : vector<2x1xf32> -> vector<2x1xf32>
    %108 = arith.truncf %69 : vector<2x128xf32> to vector<2x128xbf16>
    %c0_54 = arith.constant 0 : index
    %c0_55 = arith.constant 0 : index
    %109 = vector.load %arg18[%c0_54, %c0_55] : memref<128x32xbf16, #tpu.memory_space<vmem>>, vector<128x32xbf16>
    %cst_56 = arith.constant dense<0.000000e+00> : vector<2x32xf32>
    %110 = tpu.matmul %108, %109, %cst_56 {dimension_numbers = #tpu.dot_dimension_numbers<[1], [0], [0], [1], [0, 0, 1, 1], [], []>} : vector<2x128xbf16>, vector<128x32xbf16>, vector<2x32xf32> -> vector<2x32xf32>
    %111 = arith.truncf %98 : vector<2x64xf32> to vector<2x64xbf16>
    %c0_57 = arith.constant 0 : index
    %c0_58 = arith.constant 0 : index
    %112 = vector.load %arg19[%c0_57, %c0_58] : memref<64x32xbf16, #tpu.memory_space<vmem>>, vector<64x32xbf16>
    %cst_59 = arith.constant dense<0.000000e+00> : vector<2x32xf32>
    %113 = tpu.matmul %111, %112, %cst_59 {dimension_numbers = #tpu.dot_dimension_numbers<[1], [0], [0], [1], [0, 0, 1, 1], [], []>} : vector<2x64xbf16>, vector<64x32xbf16>, vector<2x32xf32> -> vector<2x32xf32>
    %114 = arith.addf %110, %113 : vector<2x32xf32>
    %115 = vector.extract_strided_slice %89 {offsets = [0, 0], sizes = [2, 32], strides = [1, 1]} : vector<2x33xf32> to vector<2x32xf32>
    %116 = arith.addf %114, %115 : vector<2x32xf32>
    %c0_60 = arith.constant 0 : index
    %c0_61 = arith.constant 0 : index
    %117 = vector.load %arg20[%c0_60, %c0_61] : memref<1x32xf32, #tpu.memory_space<vmem>>, vector<1x32xf32>
    %118 = vector.broadcast %117 : vector<1x32xf32> to vector<2x32xf32>
    %119 = arith.addf %116, %118 : vector<2x32xf32>
    %cst_62 = arith.constant 0.000000e+00 : f32
    %120 = vector.broadcast %cst_62 : f32 to vector<2x32xf32>
    %121 = arith.maximumf %119, %120 : vector<2x32xf32>
    %122 = arith.truncf %121 : vector<2x32xf32> to vector<2x32xbf16>
    %c0_63 = arith.constant 0 : index
    %c0_64 = arith.constant 0 : index
    %123 = vector.load %arg21[%c0_63, %c0_64] : memref<32x32xbf16, #tpu.memory_space<vmem>>, vector<32x32xbf16>
    %cst_65 = arith.constant dense<0.000000e+00> : vector<2x32xf32>
    %124 = tpu.matmul %122, %123, %cst_65 {dimension_numbers = #tpu.dot_dimension_numbers<[1], [0], [0], [1], [0, 0, 1, 1], [], []>} : vector<2x32xbf16>, vector<32x32xbf16>, vector<2x32xf32> -> vector<2x32xf32>
    %c0_66 = arith.constant 0 : index
    %c0_67 = arith.constant 0 : index
    %125 = vector.load %arg22[%c0_66, %c0_67] : memref<1x32xf32, #tpu.memory_space<vmem>>, vector<1x32xf32>
    %126 = vector.broadcast %125 : vector<1x32xf32> to vector<2x32xf32>
    %127 = arith.addf %124, %126 : vector<2x32xf32>
    %cst_68 = arith.constant 0.000000e+00 : f32
    %128 = vector.broadcast %cst_68 : f32 to vector<2x32xf32>
    %129 = arith.maximumf %127, %128 : vector<2x32xf32>
    %130 = arith.truncf %129 : vector<2x32xf32> to vector<2x32xbf16>
    %c0_69 = arith.constant 0 : index
    %c0_70 = arith.constant 0 : index
    %131 = vector.load %arg23[%c0_69, %c0_70] : memref<32x1xbf16, #tpu.memory_space<vmem>>, vector<32x1xbf16>
    %cst_71 = arith.constant dense<0.000000e+00> : vector<2x1xf32>
    %132 = tpu.matmul %130, %131, %cst_71 {dimension_numbers = #tpu.dot_dimension_numbers<[1], [0], [0], [1], [0, 0, 1, 1], [], []>} : vector<2x32xbf16>, vector<32x1xbf16>, vector<2x1xf32> -> vector<2x1xf32>
    %c0_72 = arith.constant 0 : index
    %c0_73 = arith.constant 0 : index
    %133 = vector.load %arg24[%c0_72, %c0_73] : memref<1x1xf32, #tpu.memory_space<vmem>>, vector<1x1xf32>
    %134 = vector.broadcast %133 : vector<1x1xf32> to vector<2x1xf32>
    %135 = arith.addf %132, %134 : vector<2x1xf32>
    %136 = tpu.iota {dimensions = array<i32: 1>} : vector<2x2xi32>
    %c0_i32_74 = arith.constant 0 : i32
    %137 = vector.broadcast %c0_i32_74 : i32 to vector<2x2xi32>
    %138 = arith.cmpi eq, %136, %137 : vector<2x2xi32>
    %139 = vector.shape_cast %135 : vector<2x1xf32> to vector<2x1xf32>
    %140 = vector.broadcast %139 : vector<2x1xf32> to vector<2x2xf32>
    %141 = vector.shape_cast %107 : vector<2x1xf32> to vector<2x1xf32>
    %142 = vector.broadcast %141 : vector<2x1xf32> to vector<2x2xf32>
    %143 = arith.select %138, %140, %142 : vector<2x2xi1>, vector<2x2xf32>
    %c0_75 = arith.constant 0 : index
    %c0_76 = arith.constant 0 : index
    %144 = vector.load %arg25[%c0_75, %c0_76] : memref<2x2xf32, #tpu.memory_space<vmem>>, vector<2x2xf32>
    tpu.vector_store %arg25[%c0_75, %c0_76], %143 {strides = array<i32>} : memref<2x2xf32, #tpu.memory_space<vmem>>, vector<2x2xf32>,
    return
  }
}

</mosaic_0001>

<llo_original>
// kernel: neural_net_forward.1
$region0: #{neural_net_forward.1}
  #allocation0 [shape = 'u32[]', space=smem, size = 0x4, offset = 0x4, fixed_abs, tag = 'smem constant byte address 0x4 - core index']
  #allocation1 [shape = 'u32[144,128]{1,0:T(1,128)}', space=vmem, size = 0x12000, scoped, tag = 'internal scratch']
  #allocation2 [shape = 'f32[1,1]{1,0:T(1,128)S(1)}', space=vmem, size = 0x200, scoped, tag = 'scoped memory for neural_net_forward.1']
  %s0 = inlined_call_operand.vmem [shape: f32[2,128], index: 0, kind: input, shape index: {}]
  %s1 = inlined_call_operand.vmem [shape: f32[2,4], index: 1, kind: input, shape index: {}]
  %s2 = inlined_call_operand.hbm [shape: bf16[128,256], index: 2, kind: input, shape index: {}]
  %s3 = inlined_call_operand.vmem [shape: f32[1,128], index: 3, kind: input, shape index: {}]
  %s4 = inlined_call_operand.vmem [shape: f32[1,128], index: 4, kind: input, shape index: {}]
  %s5 = inlined_call_operand.vmem [shape: f32[1,128], index: 5, kind: input, shape index: {}]
  %s6 = inlined_call_operand.vmem [shape: f32[1,128], index: 6, kind: input, shape index: {}]
  %s7 = inlined_call_operand.vmem [shape: bf16[128,512], index: 7, kind: input, shape index: {}]
  %s8 = inlined_call_operand.vmem [shape: f32[1,512], index: 8, kind: input, shape index: {}]
  %s9 = inlined_call_operand.hbm [shape: bf16[512,128], index: 9, kind: input, shape index: {}]
  %s10 = inlined_call_operand.vmem [shape: f32[1,128], index: 10, kind: input, shape index: {}]
  %s11 = inlined_call_operand.hbm [shape: bf16[128,256], index: 11, kind: input, shape index: {}]
  %s12 = inlined_call_operand.vmem [shape: f32[1,256], index: 12, kind: input, shape index: {}]
  %s13 = inlined_call_operand.hbm [shape: bf16[256,256], index: 13, kind: input, shape index: {}]
  %s14 = inlined_call_operand.vmem [shape: f32[1,256], index: 14, kind: input, shape index: {}]
  %s15 = inlined_call_operand.vmem [shape: bf16[256,65], index: 15, kind: input, shape index: {}]
  %s16 = inlined_call_operand.vmem [shape: f32[1,65], index: 16, kind: input, shape index: {}]
  %s17 = inlined_call_operand.vmem [shape: bf16[4,33], index: 17, kind: input, shape index: {}]
  %s18 = inlined_call_operand.vmem [shape: bf16[128,32], index: 18, kind: input, shape index: {}]
  %s19 = inlined_call_operand.vmem [shape: bf16[64,32], index: 19, kind: input, shape index: {}]
  %s20 = inlined_call_operand.hbm [shape: f32[1,32], index: 20, kind: input, shape index: {}]
  %s21 = inlined_call_operand.vmem [shape: bf16[32,32], index: 21, kind: input, shape index: {}]
  %s22 = inlined_call_operand.hbm [shape: f32[1,32], index: 22, kind: input, shape index: {}]
  %s23 = inlined_call_operand.vmem [shape: bf16[32,1], index: 23, kind: input, shape index: {}]
  %s24 = inlined_call_operand.<no memory space> [shape: f32[1,1], index: 24, kind: input, shape index: {}]
  %s25 = inlined_call_operand.vmem [shape: f32[2,2], index: 25, kind: output, shape index: {}]
  %s26 = sld [smem:[#allocation0]]
  $region134: #{neural_net_forward.1} parent=0
    _
  %s28 = ssub.s32 1, %s26
  %s29 = scalar_select 0, %s28, %s26
  %v30 = vstv %s24
  %31 = vst [vmem:[#allocation2] sm:$0x1] %v30
  $region1: #{neural_net_forward.1} parent=0
    #allocation3 [shape = 'u8[65536]{0}', space=vmem, size = 0x10000, scoped, tag = 'input window, operand 2, single buffered']
    #allocation4 [shape = 's32[1]{0}', space=sflag, size = 0x4, scoped, tag = 'scoped memory for neural_net_forward.1']
    #allocation5 [shape = 'u8[131072]{0}', space=vmem, size = 0x20000, scoped, tag = 'input window, operand 9, single buffered']
    #allocation6 [shape = 's32[1]{0}', space=sflag, size = 0x4, scoped, tag = 'scoped memory for neural_net_forward.1']
    #allocation7 [shape = 'u8[65536]{0}', space=vmem, size = 0x10000, scoped, tag = 'input window, operand 11, single buffered']
    #allocation8 [shape = 'u8[131072]{0}', space=vmem, size = 0x20000, scoped, tag = 'input window, operand 13, single buffered']
    #allocation9 [shape = 's32[1]{0}', space=sflag, size = 0x4, scoped, tag = 'scoped memory for neural_net_forward.1']
    #allocation10 [shape = 'u8[512]{0}', space=vmem, size = 0x400, scoped, tag = 'input window, operand 20, single buffered']
    #allocation11 [shape = 'u8[512]{0}', space=vmem, size = 0x400, scoped, tag = 'input window, operand 22, single buffered']
    #allocation12 [shape = 's32[1]{0}', space=sflag, size = 0x4, scoped, tag = 'scoped memory for neural_net_forward.1']
    %32 = vsyncpa [#allocation4], 0
    %33 = vsyncpa [#allocation6], 0
    %34 = vsyncpa [#allocation9], 0
    %35 = vsyncpa [#allocation12], 0
    // Predicated region
    $region2: #{neural_net_forward.1} parent=1 // pred_check
      _
    $region3: #{neural_net_forward.1} parent=1 // pred_check_branch
      %37 = sbr.rel (0) target = $region5
    $region4: #{neural_net_forward.1} parent=1 // pred_region
      _
    $region5: #{neural_net_forward.1} parent=1 // pred_fallthru
      _
    // Predicated region
    $region6: #{neural_net_forward.1} parent=1 // pred_check
      _
    $region7: #{neural_net_forward.1} parent=1 // pred_check_branch
      %39 = sbr.rel (0) target = $region9
    $region8: #{neural_net_forward.1} parent=1 // pred_region
      _
    $region9: #{neural_net_forward.1} parent=1 // pred_fallthru
      _
    // Predicated region
    $region10: #{neural_net_forward.1} parent=1 // pred_check
      _
    $region11: #{neural_net_forward.1} parent=1 // pred_check_branch
      %41 = sbr.rel (0) target = $region13
    $region12: #{neural_net_forward.1} parent=1 // pred_region
      %s43 = ssub.s32 2048, 2048
      %44 = vsyncadd [#allocation4], %s43
      %s45 = sshll.u32 [#allocation3], 4
      %s46 = int_to_ptr.vmem [resolvable:$true] %s45
      %51 = dma.hbm_to_vmem [thread:$0]  %s2, 2048, %s46, [#allocation4], 128, 128, 8
    $region13: #{neural_net_forward.1} parent=1 // pred_fallthru
      _
    // Predicated region
    $region14: #{neural_net_forward.1} parent=1 // pred_check
      _
    $region15: #{neural_net_forward.1} parent=1 // pred_check_branch
      %53 = sbr.rel (0) target = $region17
    $region16: #{neural_net_forward.1} parent=1 // pred_region
      _
    $region17: #{neural_net_forward.1} parent=1 // pred_fallthru
      _
    // Predicated region
    $region18: #{neural_net_forward.1} parent=1 // pred_check
      _
    $region19: #{neural_net_forward.1} parent=1 // pred_check_branch
      %55 = sbr.rel (0) target = $region21
    $region20: #{neural_net_forward.1} parent=1 // pred_region
      _
    $region21: #{neural_net_forward.1} parent=1 // pred_fallthru
      _
    // Predicated region
    $region22: #{neural_net_forward.1} parent=1 // pred_check
      _
    $region23: #{neural_net_forward.1} parent=1 // pred_check_branch
      %57 = sbr.rel (0) target = $region25
    $region24: #{neural_net_forward.1} parent=1 // pred_region
      _
    $region25: #{neural_net_forward.1} parent=1 // pred_fallthru
      _
    // Predicated region
    $region26: #{neural_net_forward.1} parent=1 // pred_check
      _
    $region27: #{neural_net_forward.1} parent=1 // pred_check_branch
      %59 = sbr.rel (0) target = $region29
    $region28: #{neural_net_forward.1} parent=1 // pred_region
      _
    $region29: #{neural_net_forward.1} parent=1 // pred_fallthru
      _
    // Predicated region
    $region30: #{neural_net_forward.1} parent=1 // pred_check
      _
    $region31: #{neural_net_forward.1} parent=1 // pred_check_branch
      %61 = sbr.rel (0) target = $region33
    $region32: #{neural_net_forward.1} parent=1 // pred_region
      _
    $region33: #{neural_net_forward.1} parent=1 // pred_fallthru
      _
    // Predicated region
    $region34: #{neural_net_forward.1} parent=1 // pred_check
      _
    $region35: #{neural_net_forward.1} parent=1 // pred_check_branch
      %63 = sbr.rel (0) target = $region37
    $region36: #{neural_net_forward.1} parent=1 // pred_region
      _
    $region37: #{neural_net_forward.1} parent=1 // pred_fallthru
      _
    // Predicated region
    $region38: #{neural_net_forward.1} parent=1 // pred_check
      _
    $region39: #{neural_net_forward.1} parent=1 // pred_check_branch
      %65 = sbr.rel (0) target = $region41
    $region40: #{neural_net_forward.1} parent=1 // pred_region
      %s67 = ssub.s32 4096, 4096
      %68 = vsyncadd [#allocation6], %s67
      %s69 = sshll.u32 [#allocation5], 4
      %s70 = int_to_ptr.vmem [resolvable:$true] %s69
      %75 = dma.hbm_to_vmem [thread:$0]  %s9, 4096, %s70, [#allocation6], 64, 64, 4
    $region41: #{neural_net_forward.1} parent=1 // pred_fallthru
      _
    // Predicated region
    $region42: #{neural_net_forward.1} parent=1 // pred_check
      _
    $region43: #{neural_net_forward.1} parent=1 // pred_check_branch
      %77 = sbr.rel (0) target = $region45
    $region44: #{neural_net_forward.1} parent=1 // pred_region
      _
    $region45: #{neural_net_forward.1} parent=1 // pred_fallthru
      _
    // Predicated region
    $region46: #{neural_net_forward.1} parent=1 // pred_check
      _
    $region47: #{neural_net_forward.1} parent=1 // pred_check_branch
      %79 = sbr.rel (0) target = $region49
    $region48: #{neural_net_forward.1} parent=1 // pred_region
      %s81 = ssub.s32 2048, 2048
      %82 = vsyncadd [#allocation6], %s81
      %s83 = sshll.u32 [#allocation7], 4
      %s84 = int_to_ptr.vmem [resolvable:$true] %s83
      %89 = dma.hbm_to_vmem [thread:$0]  %s11, 2048, %s84, [#allocation6], 128, 128, 8
    $region49: #{neural_net_forward.1} parent=1 // pred_fallthru
      _
    // Predicated region
    $region50: #{neural_net_forward.1} parent=1 // pred_check
      _
    $region51: #{neural_net_forward.1} parent=1 // pred_check_branch
      %91 = sbr.rel (0) target = $region53
    $region52: #{neural_net_forward.1} parent=1 // pred_region
      _
    $region53: #{neural_net_forward.1} parent=1 // pred_fallthru
      _
    // Predicated region
    $region54: #{neural_net_forward.1} parent=1 // pred_check
      _
    $region55: #{neural_net_forward.1} parent=1 // pred_check_branch
      %93 = sbr.rel (0) target = $region57
    $region56: #{neural_net_forward.1} parent=1 // pred_region
      %s95 = ssub.s32 4096, 4096
      %96 = vsyncadd [#allocation9], %s95
      %s97 = sshll.u32 [#allocation8], 4
      %s98 = int_to_ptr.vmem [resolvable:$true] %s97
      %103 = dma.hbm_to_vmem [thread:$0]  %s13, 4096, %s98, [#allocation9], 128, 128, 8
    $region57: #{neural_net_forward.1} parent=1 // pred_fallthru
      _
    // Predicated region
    $region58: #{neural_net_forward.1} parent=1 // pred_check
      _
    $region59: #{neural_net_forward.1} parent=1 // pred_check_branch
      %105 = sbr.rel (0) target = $region61
    $region60: #{neural_net_forward.1} parent=1 // pred_region
      _
    $region61: #{neural_net_forward.1} parent=1 // pred_fallthru
      _
    // Predicated region
    $region62: #{neural_net_forward.1} parent=1 // pred_check
      _
    $region63: #{neural_net_forward.1} parent=1 // pred_check_branch
      %107 = sbr.rel (0) target = $region65
    $region64: #{neural_net_forward.1} parent=1 // pred_region
      _
    $region65: #{neural_net_forward.1} parent=1 // pred_fallthru
      _
    // Predicated region
    $region66: #{neural_net_forward.1} parent=1 // pred_check
      _
    $region67: #{neural_net_forward.1} parent=1 // pred_check_branch
      %109 = sbr.rel (0) target = $region69
    $region68: #{neural_net_forward.1} parent=1 // pred_region
      _
    $region69: #{neural_net_forward.1} parent=1 // pred_fallthru
      _
    // Predicated region
    $region70: #{neural_net_forward.1} parent=1 // pred_check
      _
    $region71: #{neural_net_forward.1} parent=1 // pred_check_branch
      %111 = sbr.rel (0) target = $region73
    $region72: #{neural_net_forward.1} parent=1 // pred_region
      _
    $region73: #{neural_net_forward.1} parent=1 // pred_fallthru
      _
    // Predicated region
    $region74: #{neural_net_forward.1} parent=1 // pred_check
      _
    $region75: #{neural_net_forward.1} parent=1 // pred_check_branch
      %113 = sbr.rel (0) target = $region77
    $region76: #{neural_net_forward.1} parent=1 // pred_region
      _
    $region77: #{neural_net_forward.1} parent=1 // pred_fallthru
      _
    // Predicated region
    $region78: #{neural_net_forward.1} parent=1 // pred_check
      _
    $region79: #{neural_net_forward.1} parent=1 // pred_check_branch
      %115 = sbr.rel (0) target = $region81
    $region80: #{neural_net_forward.1} parent=1 // pred_region
      _
    $region81: #{neural_net_forward.1} parent=1 // pred_fallthru
      _
    // Predicated region
    $region82: #{neural_net_forward.1} parent=1 // pred_check
      _
    $region83: #{neural_net_forward.1} parent=1 // pred_check_branch
      %117 = sbr.rel (0) target = $region85
    $region84: #{neural_net_forward.1} parent=1 // pred_region
      %s119 = ssub.s32 16, 16
      %120 = vsyncadd [#allocation9], %s119
      %s122 = sshll.u32 [#allocation10], 4
      %s123 = int_to_ptr.vmem [resolvable:$true] %s122
      %125 = dma.hbm_to_vmem [thread:$0]  %s20, 16, %s123, [#allocation9]
    $region85: #{neural_net_forward.1} parent=1 // pred_fallthru
      _
    // Predicated region
    $region86: #{neural_net_forward.1} parent=1 // pred_check
      _
    $region87: #{neural_net_forward.1} parent=1 // pred_check_branch
      %127 = sbr.rel (0) target = $region89
    $region88: #{neural_net_forward.1} parent=1 // pred_region
      _
    $region89: #{neural_net_forward.1} parent=1 // pred_fallthru
      _
    // Predicated region
    $region90: #{neural_net_forward.1} parent=1 // pred_check
      _
    $region91: #{neural_net_forward.1} parent=1 // pred_check_branch
      %129 = sbr.rel (0) target = $region93
    $region92: #{neural_net_forward.1} parent=1 // pred_region
      %s131 = ssub.s32 16, 16
      %132 = vsyncadd [#allocation12], %s131
      %s134 = sshll.u32 [#allocation11], 4
      %s135 = int_to_ptr.vmem [resolvable:$true] %s134
      %137 = dma.hbm_to_vmem [thread:$0]  %s22, 16, %s135, [#allocation12]
    $region93: #{neural_net_forward.1} parent=1 // pred_fallthru
      _
    // Predicated region
    $region94: #{neural_net_forward.1} parent=1 // pred_check
      _
    $region95: #{neural_net_forward.1} parent=1 // pred_check_branch
      %139 = sbr.rel (0) target = $region97
    $region96: #{neural_net_forward.1} parent=1 // pred_region
      _
    $region97: #{neural_net_forward.1} parent=1 // pred_fallthru
      _
    // Predicated region
    $region98: #{neural_net_forward.1} parent=1 // pred_check
      _
    $region99: #{neural_net_forward.1} parent=1 // pred_check_branch
      %141 = sbr.rel (0) target = $region101
    $region100: #{neural_net_forward.1} parent=1 // pred_region
      _
    $region101: #{neural_net_forward.1} parent=1 // pred_fallthru
      _
    // Predicated region
    $region102: #{neural_net_forward.1} parent=1 // pred_check
      _
    $region103: #{neural_net_forward.1} parent=1 // pred_check_branch
      %143 = sbr.rel (0) target = $region105
    $region104: #{neural_net_forward.1} parent=1 // pred_region
      %144 = dma.done [#allocation4], 2048
    $region105: #{neural_net_forward.1} parent=1 // pred_fallthru
      _
    // Predicated region
    $region106: #{neural_net_forward.1} parent=1 // pred_check
      _
    $region107: #{neural_net_forward.1} parent=1 // pred_check_branch
      %146 = sbr.rel (0) target = $region109
    $region108: #{neural_net_forward.1} parent=1 // pred_region
      %147 = dma.done [#allocation6], 4096
    $region109: #{neural_net_forward.1} parent=1 // pred_fallthru
      _
    // Predicated region
    $region110: #{neural_net_forward.1} parent=1 // pred_check
      _
    $region111: #{neural_net_forward.1} parent=1 // pred_check_branch
      %149 = sbr.rel (0) target = $region113
    $region112: #{neural_net_forward.1} parent=1 // pred_region
      %150 = dma.done [#allocation6], 2048
    $region113: #{neural_net_forward.1} parent=1 // pred_fallthru
      _
    // Predicated region
    $region114: #{neural_net_forward.1} parent=1 // pred_check
      _
    $region115: #{neural_net_forward.1} parent=1 // pred_check_branch
      %152 = sbr.rel (0) target = $region117
    $region116: #{neural_net_forward.1} parent=1 // pred_region
      %153 = dma.done [#allocation9], 4096
    $region117: #{neural_net_forward.1} parent=1 // pred_fallthru
      _
    // Predicated region
    $region118: #{neural_net_forward.1} parent=1 // pred_check
      _
    $region119: #{neural_net_forward.1} parent=1 // pred_check_branch
      %155 = sbr.rel (0) target = $region121
    $region120: #{neural_net_forward.1} parent=1 // pred_region
      %156 = dma.done [#allocation9], 16
    $region121: #{neural_net_forward.1} parent=1 // pred_fallthru
      _
    // Predicated region
    $region122: #{neural_net_forward.1} parent=1 // pred_check
      _
    $region123: #{neural_net_forward.1} parent=1 // pred_check_branch
      %158 = sbr.rel (0) target = $region125
    $region124: #{neural_net_forward.1} parent=1 // pred_region
      %159 = dma.done [#allocation12], 16
    $region125: #{neural_net_forward.1} parent=1 // pred_fallthru
      _
    %v161 = vld [vmem:[%s0] sm:$0x3]
    %v162 = vld [vmem:[%s1] sm:$0x3]
    %vm163 = vcmask 1041408
    %v164 = vsel %vm163, %v161, 0.0
    %v165 = vrot.slane %v164, 4
    %v166 = vadd.f32 %v164, %v165
    %v167 = vrot.slane %v166, 2
    %v168 = vadd.f32 %v166, %v167
    %v169 = vrot.slane %v168, 1
    %v170 = vadd.f32 %v168, %v169
    %v171 = vrcp.pop 2.0
    %v172 = vmul.f32 %v170, %v171
    %v173 = vmul.f32 %v161, %v161
    %v174 = vsel %vm163, %v173, 0.0
    %v175 = vrot.slane %v174, 4
    %v176 = vadd.f32 %v174, %v175
    %v177 = vrot.slane %v176, 2
    %v178 = vadd.f32 %v176, %v177
    %v179 = vrot.slane %v178, 1
    %v180 = vadd.f32 %v178, %v179
    %v181 = vmul.f32 %v180, %v171
    %v182 = vlaneseq
    %v183 = vshrl.u32 %v182, 7
    %vm184 = vcmp.eq.s32.totalorder %v183, 0
    %v185 = vsel %vm184, %v172, %v181
    %v186 = vpack.c.bf16 %v185, %v185
    %v187 = vld [vmem:[#allocation3] sm:$0xff]
    %v188 = vld [vmem:[#allocation3 + $0x8] sm:$0xff]
    %v189 = vld [vmem:[#allocation3 + $0x10] sm:$0xff]
    %v190 = vld [vmem:[#allocation3 + $0x18] sm:$0xff]
    %v191 = vld [vmem:[#allocation3 + $0x20] sm:$0xff]
    %v192 = vld [vmem:[#allocation3 + $0x28] sm:$0xff]
    %v193 = vld [vmem:[#allocation3 + $0x30] sm:$0xff]
    %v194 = vld [vmem:[#allocation3 + $0x38] sm:$0xff]
    %v195 = vld [vmem:[#allocation3 + $0x40] sm:$0xff]
    %v196 = vld [vmem:[#allocation3 + $0x48] sm:$0xff]
    %v197 = vld [vmem:[#allocation3 + $0x50] sm:$0xff]
    %v198 = vld [vmem:[#allocation3 + $0x58] sm:$0xff]
    %v199 = vld [vmem:[#allocation3 + $0x60] sm:$0xff]
    %v200 = vld [vmem:[#allocation3 + $0x68] sm:$0xff]
    %v201 = vld [vmem:[#allocation3 + $0x70] sm:$0xff]
    %v202 = vld [vmem:[#allocation3 + $0x78] sm:$0xff]
    %v219 = vunpack.c.l.b16 %v187
    %v220 = vunpack.c.h.b16 %v187
    %v221 = vunpack.c.l.b16 %v188
    %v222 = vunpack.c.h.b16 %v188
    %v223 = vunpack.c.l.b16 %v189
    %v224 = vunpack.c.h.b16 %v189
    %v225 = vunpack.c.l.b16 %v190
    %v226 = vunpack.c.h.b16 %v190
    %v227 = vunpack.c.l.b16 %v191
    %v228 = vunpack.c.h.b16 %v191
    %v229 = vunpack.c.l.b16 %v192
    %v230 = vunpack.c.h.b16 %v192
    %v231 = vunpack.c.l.b16 %v193
    %v232 = vunpack.c.h.b16 %v193
    %v233 = vunpack.c.l.b16 %v194
    %v234 = vunpack.c.h.b16 %v194
    %v235 = vunpack.c.l.b16 %v195
    %v236 = vunpack.c.h.b16 %v195
    %v237 = vunpack.c.l.b16 %v196
    %v238 = vunpack.c.h.b16 %v196
    %v239 = vunpack.c.l.b16 %v197
    %v240 = vunpack.c.h.b16 %v197
    %v241 = vunpack.c.l.b16 %v198
    %v242 = vunpack.c.h.b16 %v198
    %v243 = vunpack.c.l.b16 %v199
    %v244 = vunpack.c.h.b16 %v199
    %v245 = vunpack.c.l.b16 %v200
    %v246 = vunpack.c.h.b16 %v200
    %v247 = vunpack.c.l.b16 %v201
    %v248 = vunpack.c.h.b16 %v201
    %v249 = vunpack.c.l.b16 %v202
    %v250 = vunpack.c.h.b16 %v202
    %v251 = vpack.c.b16 %v221, %v219
    %v252 = vpack.c.b16 %v222, %v220
    %v253 = vpack.c.b16 %v225, %v223
    %v254 = vpack.c.b16 %v226, %v224
    %v255 = vpack.c.b16 %v229, %v227
    %v256 = vpack.c.b16 %v230, %v228
    %v257 = vpack.c.b16 %v233, %v231
    %v258 = vpack.c.b16 %v234, %v232
    %v259 = vpack.c.b16 %v237, %v235
    %v260 = vpack.c.b16 %v238, %v236
    %v261 = vpack.c.b16 %v241, %v239
    %v262 = vpack.c.b16 %v242, %v240
    %v263 = vpack.c.b16 %v245, %v243
    %v264 = vpack.c.b16 %v246, %v244
    %v265 = vpack.c.b16 %v249, %v247
    %v266 = vpack.c.b16 %v250, %v248
    %283 = vmatprep.subr.bf16.mxu0 %v266
    %284 = vmatpush1.bf16.msra.mxu0 %v265
    %285 = vmatprep.subr.bf16.mxu0 %v264
    %286 = vmatpush1.bf16.msra.mxu0 %v263
    %287 = vmatprep.subr.bf16.mxu0 %v262
    %288 = vmatpush1.bf16.msra.mxu0 %v261
    %289 = vmatprep.subr.bf16.mxu0 %v260
    %290 = vmatpush1.bf16.msra.mxu0 %v259
    %291 = vmatprep.subr.bf16.mxu0 %v258
    %292 = vmatpush1.bf16.msra.mxu0 %v257
    %293 = vmatprep.subr.bf16.mxu0 %v256
    %294 = vmatpush1.bf16.msra.mxu0 %v255
    %295 = vmatprep.subr.bf16.mxu0 %v254
    %296 = vmatpush1.bf16.msra.mxu0 %v253
    %297 = vmatprep.subr.bf16.mxu0 %v252
    %298 = vmatpush1.bf16.msra.mxu0 %v251
    %299 = vmatprep.subr.bf16.mxu0 0
    %300 = vmatpush2.bf16.msra.mxu0 0
    %301 = vmatprep.subr.bf16.mxu0 0
    %302 = vmatpush2.bf16.msra.mxu0 0
    %303 = vmatprep.subr.bf16.mxu0 0
    %304 = vmatpush2.bf16.msra.mxu0 0
    %305 = vmatprep.subr.bf16.mxu0 0
    %306 = vmatpush2.bf16.msra.mxu0 0
    %307 = vmatprep.subr.bf16.mxu0 0
    %308 = vmatpush2.bf16.msra.mxu0 0
    %309 = vmatprep.subr.bf16.mxu0 0
    %310 = vmatpush2.bf16.msra.mxu0 0
    %311 = vmatprep.subr.bf16.mxu0 0
    %312 = vmatpush2.bf16.msra.mxu0 0
    %313 = vmatprep.subr.bf16.mxu0 0
    %314 = vmatpush2.bf16.msra.mxu0 0
    %315 = vmatprep.mubr.bf16.mxu0 0
    %316 = vmatmul.mubr.bf16.gmra.mxu0 %v186
    %v317 = vpop.f32.mrf.mxu0
    %v318 = vadd.f32 0.0, %v317
    %v319 = vpop.f32.mrf.mxu0
    %v320 = vadd.f32 0.0, %v319
    %v321 = vpop.f32.mrf.mxu0
    %v322 = vpop.f32.mrf.mxu0
    %323 = vdwg.mxu0
    %v324 = vmul.f32 %v318, %v318
    %v326 = vrot.slane %v324, 7
    %v328 = vsub.f32 %v318, %v326
    %v329 = vadd.f32 %v328, 1e-05
    %v330 = vrsqrt.pop %v329
    %v331 = vmul.f32 %v320, %v320
    %v333 = vrot.slane %v331, 7
    %v335 = vsub.f32 %v320, %v333
    %v336 = vadd.f32 %v335, 1e-05
    %v337 = vrsqrt.pop %v336
    %v338 = vlaneseq
    %v339 = vshrl.u32 %v338, 7
    %v340 = vsub.s32 0, %v339
    %v341 = vrot.slane %v318, %v340
    %v342 = vsub.f32 %v161, %v341
    %v343 = vld [vmem:[%s3] sm:$0x1]
    %v345 = vlaneseq
    %v346 = vshrl.u32 %v345, 7
    %v347 = vsub.s32 0, %v346
    %v348 = vrot.slane %v343, %v347
    %v350 = vmul.f32 %v330, %v348
    %v351 = vlaneseq
    %v352 = vshrl.u32 %v351, 7
    %v353 = vsub.s32 1, %v352
    %v354 = vrot.slane %v350, %v353
    %v355 = vmul.f32 %v342, %v354
    %v356 = vld [vmem:[%s4] sm:$0x1]
    %v358 = vlaneseq
    %v359 = vshrl.u32 %v358, 7
    %v360 = vsub.s32 0, %v359
    %v361 = vrot.slane %v356, %v360
    %v363 = vadd.f32 %v355, %v361
    %v364 = vlaneseq
    %v365 = vshrl.u32 %v364, 7
    %v366 = vsub.s32 0, %v365
    %v367 = vrot.slane %v320, %v366
    %v368 = vsub.f32 %v161, %v367
    %v369 = vld [vmem:[%s5] sm:$0x1]
    %v371 = vlaneseq
    %v372 = vshrl.u32 %v371, 7
    %v373 = vsub.s32 0, %v372
    %v374 = vrot.slane %v369, %v373
    %v376 = vmul.f32 %v337, %v374
    %v377 = vlaneseq
    %v378 = vshrl.u32 %v377, 7
    %v379 = vsub.s32 1, %v378
    %v380 = vrot.slane %v376, %v379
    %v381 = vmul.f32 %v368, %v380
    %v382 = vld [vmem:[%s6] sm:$0x1]
    %v384 = vlaneseq
    %v385 = vshrl.u32 %v384, 7
    %v386 = vsub.s32 0, %v385
    %v387 = vrot.slane %v382, %v386
    %v389 = vadd.f32 %v381, %v387
    %v390 = vpack.c.bf16 %v363, %v363
    %v391 = vld [vmem:[%s7] sm:$0xff]
    %v392 = vld [vmem:[%s7 + $0x8] sm:$0xff]
    %v393 = vld [vmem:[%s7 + $0x10] sm:$0xff]
    %v394 = vld [vmem:[%s7 + $0x18] sm:$0xff]
    %v395 = vld [vmem:[%s7 + $0x20] sm:$0xff]
    %v396 = vld [vmem:[%s7 + $0x28] sm:$0xff]
    %v397 = vld [vmem:[%s7 + $0x30] sm:$0xff]
    %v398 = vld [vmem:[%s7 + $0x38] sm:$0xff]
    %v399 = vld [vmem:[%s7 + $0x40] sm:$0xff]
    %v400 = vld [vmem:[%s7 + $0x48] sm:$0xff]
    %v401 = vld [vmem:[%s7 + $0x50] sm:$0xff]
    %v402 = vld [vmem:[%s7 + $0x58] sm:$0xff]
    %v403 = vld [vmem:[%s7 + $0x60] sm:$0xff]
    %v404 = vld [vmem:[%s7 + $0x68] sm:$0xff]
    %v405 = vld [vmem:[%s7 + $0x70] sm:$0xff]
    %v406 = vld [vmem:[%s7 + $0x78] sm:$0xff]
    %v407 = vld [vmem:[%s7 + $0x80] sm:$0xff]
    %v408 = vld [vmem:[%s7 + $0x88] sm:$0xff]
    %v409 = vld [vmem:[%s7 + $0x90] sm:$0xff]
    %v410 = vld [vmem:[%s7 + $0x98] sm:$0xff]
    %v411 = vld [vmem:[%s7 + $0xa0] sm:$0xff]
    %v412 = vld [vmem:[%s7 + $0xa8] sm:$0xff]
    %v413 = vld [vmem:[%s7 + $0xb0] sm:$0xff]
    %v414 = vld [vmem:[%s7 + $0xb8] sm:$0xff]
    %v415 = vld [vmem:[%s7 + $0xc0] sm:$0xff]
    %v416 = vld [vmem:[%s7 + $0xc8] sm:$0xff]
    %v417 = vld [vmem:[%s7 + $0xd0] sm:$0xff]
    %v418 = vld [vmem:[%s7 + $0xd8] sm:$0xff]
    %v419 = vld [vmem:[%s7 + $0xe0] sm:$0xff]
    %v420 = vld [vmem:[%s7 + $0xe8] sm:$0xff]
    %v421 = vld [vmem:[%s7 + $0xf0] sm:$0xff]
    %v422 = vld [vmem:[%s7 + $0xf8] sm:$0xff]
    %v423 = vld [vmem:[%s8] sm:$0xf]
    %v425 = vlaneseq
    %v426 = vshrl.u32 %v425, 7
    %v427 = vsub.s32 0, %v426
    %v428 = vrot.slane %v423, %v427
    %v429 = vlaneseq
    %v430 = vshrl.u32 %v429, 7
    %v431 = vsub.s32 1, %v430
    %v432 = vrot.slane %v423, %v431
    %v433 = vlaneseq
    %v434 = vshrl.u32 %v433, 7
    %v435 = vsub.s32 2, %v434
    %v436 = vrot.slane %v423, %v435
    %v437 = vlaneseq
    %v438 = vshrl.u32 %v437, 7
    %v439 = vsub.s32 3, %v438
    %v440 = vrot.slane %v423, %v439
    %v477 = vunpack.c.l.b16 %v391
    %v478 = vunpack.c.h.b16 %v391
    %v479 = vunpack.c.l.b16 %v392
    %v480 = vunpack.c.h.b16 %v392
    %v481 = vunpack.c.l.b16 %v393
    %v482 = vunpack.c.h.b16 %v393
    %v483 = vunpack.c.l.b16 %v394
    %v484 = vunpack.c.h.b16 %v394
    %v485 = vunpack.c.l.b16 %v395
    %v486 = vunpack.c.h.b16 %v395
    %v487 = vunpack.c.l.b16 %v396
    %v488 = vunpack.c.h.b16 %v396
    %v489 = vunpack.c.l.b16 %v397
    %v490 = vunpack.c.h.b16 %v397
    %v491 = vunpack.c.l.b16 %v398
    %v492 = vunpack.c.h.b16 %v398
    %v493 = vunpack.c.l.b16 %v399
    %v494 = vunpack.c.h.b16 %v399
    %v495 = vunpack.c.l.b16 %v400
    %v496 = vunpack.c.h.b16 %v400
    %v497 = vunpack.c.l.b16 %v401
    %v498 = vunpack.c.h.b16 %v401
    %v499 = vunpack.c.l.b16 %v402
    %v500 = vunpack.c.h.b16 %v402
    %v501 = vunpack.c.l.b16 %v403
    %v502 = vunpack.c.h.b16 %v403
    %v503 = vunpack.c.l.b16 %v404
    %v504 = vunpack.c.h.b16 %v404
    %v505 = vunpack.c.l.b16 %v405
    %v506 = vunpack.c.h.b16 %v405
    %v507 = vunpack.c.l.b16 %v406
    %v508 = vunpack.c.h.b16 %v406
    %v509 = vunpack.c.l.b16 %v407
    %v510 = vunpack.c.h.b16 %v407
    %v511 = vunpack.c.l.b16 %v408
    %v512 = vunpack.c.h.b16 %v408
    %v513 = vunpack.c.l.b16 %v409
    %v514 = vunpack.c.h.b16 %v409
    %v515 = vunpack.c.l.b16 %v410
    %v516 = vunpack.c.h.b16 %v410
    %v517 = vunpack.c.l.b16 %v411
    %v518 = vunpack.c.h.b16 %v411
    %v519 = vunpack.c.l.b16 %v412
    %v520 = vunpack.c.h.b16 %v412
    %v521 = vunpack.c.l.b16 %v413
    %v522 = vunpack.c.h.b16 %v413
    %v523 = vunpack.c.l.b16 %v414
    %v524 = vunpack.c.h.b16 %v414
    %v525 = vunpack.c.l.b16 %v415
    %v526 = vunpack.c.h.b16 %v415
    %v527 = vunpack.c.l.b16 %v416
    %v528 = vunpack.c.h.b16 %v416
    %v529 = vunpack.c.l.b16 %v417
    %v530 = vunpack.c.h.b16 %v417
    %v531 = vunpack.c.l.b16 %v418
    %v532 = vunpack.c.h.b16 %v418
    %v533 = vunpack.c.l.b16 %v419
    %v534 = vunpack.c.h.b16 %v419
    %v535 = vunpack.c.l.b16 %v420
    %v536 = vunpack.c.h.b16 %v420
    %v537 = vunpack.c.l.b16 %v421
    %v538 = vunpack.c.h.b16 %v421
    %v539 = vunpack.c.l.b16 %v422
    %v540 = vunpack.c.h.b16 %v422
    %v541 = vpack.c.b16 %v481, %v477
    %v542 = vpack.c.b16 %v482, %v478
    %v543 = vpack.c.b16 %v483, %v479
    %v544 = vpack.c.b16 %v484, %v480
    %v545 = vpack.c.b16 %v489, %v485
    %v546 = vpack.c.b16 %v490, %v486
    %v547 = vpack.c.b16 %v491, %v487
    %v548 = vpack.c.b16 %v492, %v488
    %v549 = vpack.c.b16 %v497, %v493
    %v550 = vpack.c.b16 %v498, %v494
    %v551 = vpack.c.b16 %v499, %v495
    %v552 = vpack.c.b16 %v500, %v496
    %v553 = vpack.c.b16 %v505, %v501
    %v554 = vpack.c.b16 %v506, %v502
    %v555 = vpack.c.b16 %v507, %v503
    %v556 = vpack.c.b16 %v508, %v504
    %v557 = vpack.c.b16 %v513, %v509
    %v558 = vpack.c.b16 %v514, %v510
    %v559 = vpack.c.b16 %v515, %v511
    %v560 = vpack.c.b16 %v516, %v512
    %v561 = vpack.c.b16 %v521, %v517
    %v562 = vpack.c.b16 %v522, %v518
    %v563 = vpack.c.b16 %v523, %v519
    %v564 = vpack.c.b16 %v524, %v520
    %v565 = vpack.c.b16 %v529, %v525
    %v566 = vpack.c.b16 %v530, %v526
    %v567 = vpack.c.b16 %v531, %v527
    %v568 = vpack.c.b16 %v532, %v528
    %v569 = vpack.c.b16 %v537, %v533
    %v570 = vpack.c.b16 %v538, %v534
    %v571 = vpack.c.b16 %v539, %v535
    %v572 = vpack.c.b16 %v540, %v536
    %605 = vmatprep.subr.bf16.mxu0 %v570
    %606 = vmatpush1.bf16.msra.mxu0 %v569
    %607 = vmatprep.subr.bf16.mxu0 %v566
    %608 = vmatpush1.bf16.msra.mxu0 %v565
    %609 = vmatprep.subr.bf16.mxu0 %v562
    %610 = vmatpush1.bf16.msra.mxu0 %v561
    %611 = vmatprep.subr.bf16.mxu0 %v558
    %612 = vmatpush1.bf16.msra.mxu0 %v557
    %613 = vmatprep.subr.bf16.mxu0 %v554
    %614 = vmatpush1.bf16.msra.mxu0 %v553
    %615 = vmatprep.subr.bf16.mxu0 %v550
    %616 = vmatpush1.bf16.msra.mxu0 %v549
    %617 = vmatprep.subr.bf16.mxu0 %v546
    %618 = vmatpush1.bf16.msra.mxu0 %v545
    %619 = vmatprep.subr.bf16.mxu0 %v542
    %620 = vmatpush1.bf16.msra.mxu0 %v541
    %621 = vmatprep.subr.bf16.mxu0 0
    %622 = vmatpush2.bf16.msra.mxu0 0
    %623 = vmatprep.subr.bf16.mxu0 0
    %624 = vmatpush2.bf16.msra.mxu0 0
    %625 = vmatprep.subr.bf16.mxu0 0
    %626 = vmatpush2.bf16.msra.mxu0 0
    %627 = vmatprep.subr.bf16.mxu0 0
    %628 = vmatpush2.bf16.msra.mxu0 0
    %629 = vmatprep.subr.bf16.mxu0 0
    %630 = vmatpush2.bf16.msra.mxu0 0
    %631 = vmatprep.subr.bf16.mxu0 0
    %632 = vmatpush2.bf16.msra.mxu0 0
    %633 = vmatprep.subr.bf16.mxu0 0
    %634 = vmatpush2.bf16.msra.mxu0 0
    %635 = vmatprep.subr.bf16.mxu0 0
    %636 = vmatpush2.bf16.msra.mxu0 0
    %637 = vmatprep.mubr.bf16.mxu0 0
    %638 = vmatmul.mubr.bf16.gmra.mxu0 %v390
    %v639 = vpop.f32.mrf.mxu0
    %v640 = vadd.f32 %v428, %v639
    %v641 = vpop.f32.mrf.mxu0
    %v642 = vadd.f32 %v432, %v641
    %v643 = vpop.f32.mrf.mxu0
    %v644 = vpop.f32.mrf.mxu0
    %645 = vdwg.mxu0
    %646 = vmatprep.subr.bf16.mxu0 %v572
    %647 = vmatpush1.bf16.msra.mxu0 %v571
    %648 = vmatprep.subr.bf16.mxu0 %v568
    %649 = vmatpush1.bf16.msra.mxu0 %v567
    %650 = vmatprep.subr.bf16.mxu0 %v564
    %651 = vmatpush1.bf16.msra.mxu0 %v563
    %652 = vmatprep.subr.bf16.mxu0 %v560
    %653 = vmatpush1.bf16.msra.mxu0 %v559
    %654 = vmatprep.subr.bf16.mxu0 %v556
    %655 = vmatpush1.bf16.msra.mxu0 %v555
    %656 = vmatprep.subr.bf16.mxu0 %v552
    %657 = vmatpush1.bf16.msra.mxu0 %v551
    %658 = vmatprep.subr.bf16.mxu0 %v548
    %659 = vmatpush1.bf16.msra.mxu0 %v547
    %660 = vmatprep.subr.bf16.mxu0 %v544
    %661 = vmatpush1.bf16.msra.mxu0 %v543
    %662 = vmatprep.subr.bf16.mxu0 0
    %663 = vmatpush2.bf16.msra.mxu0 0
    %664 = vmatprep.subr.bf16.mxu0 0
    %665 = vmatpush2.bf16.msra.mxu0 0
    %666 = vmatprep.subr.bf16.mxu0 0
    %667 = vmatpush2.bf16.msra.mxu0 0
    %668 = vmatprep.subr.bf16.mxu0 0
    %669 = vmatpush2.bf16.msra.mxu0 0
    %670 = vmatprep.subr.bf16.mxu0 0
    %671 = vmatpush2.bf16.msra.mxu0 0
    %672 = vmatprep.subr.bf16.mxu0 0
    %673 = vmatpush2.bf16.msra.mxu0 0
    %674 = vmatprep.subr.bf16.mxu0 0
    %675 = vmatpush2.bf16.msra.mxu0 0
    %676 = vmatprep.subr.bf16.mxu0 0
    %677 = vmatpush2.bf16.msra.mxu0 0
    %678 = vmatprep.mubr.bf16.mxu0 0
    %679 = vmatmul.mubr.bf16.gmra.mxu0 %v390
    %v680 = vpop.f32.mrf.mxu0
    %v681 = vadd.f32 %v436, %v680
    %v682 = vpop.f32.mrf.mxu0
    %v683 = vadd.f32 %v440, %v682
    %v684 = vpop.f32.mrf.mxu0
    %v685 = vpop.f32.mrf.mxu0
    %686 = vdwg.mxu0
    %v687 = vmax.f32 %v640, 0.0
    %v688 = vmax.f32 %v642, 0.0
    %v689 = vmax.f32 %v681, 0.0
    %v690 = vmax.f32 %v683, 0.0
    %v691 = vpack.c.bf16 %v687, %v687
    %v692 = vpack.c.bf16 %v688, %v688
    %v693 = vpack.c.bf16 %v689, %v689
    %v694 = vpack.c.bf16 %v690, %v690
    %v695 = vld [vmem:[#allocation5] sm:$0xf]
    %v696 = vld [vmem:[#allocation5 + $0x4] sm:$0xf]
    %v697 = vld [vmem:[#allocation5 + $0x8] sm:$0xf]
    %v698 = vld [vmem:[#allocation5 + $0xc] sm:$0xf]
    %v699 = vld [vmem:[#allocation5 + $0x10] sm:$0xf]
    %v700 = vld [vmem:[#allocation5 + $0x14] sm:$0xf]
    %v701 = vld [vmem:[#allocation5 + $0x18] sm:$0xf]
    %v702 = vld [vmem:[#allocation5 + $0x1c] sm:$0xf]
    %v703 = vld [vmem:[#allocation5 + $0x20] sm:$0xf]
    %v704 = vld [vmem:[#allocation5 + $0x24] sm:$0xf]
    %v705 = vld [vmem:[#allocation5 + $0x28] sm:$0xf]
    %v706 = vld [vmem:[#allocation5 + $0x2c] sm:$0xf]
    %v707 = vld [vmem:[#allocation5 + $0x30] sm:$0xf]
    %v708 = vld [vmem:[#allocation5 + $0x34] sm:$0xf]
    %v709 = vld [vmem:[#allocation5 + $0x38] sm:$0xf]
    %v710 = vld [vmem:[#allocation5 + $0x3c] sm:$0xf]
    %v711 = vld [vmem:[#allocation5 + $0x40] sm:$0xf]
    %v712 = vld [vmem:[#allocation5 + $0x44] sm:$0xf]
    %v713 = vld [vmem:[#allocation5 + $0x48] sm:$0xf]
    %v714 = vld [vmem:[#allocation5 + $0x4c] sm:$0xf]
    %v715 = vld [vmem:[#allocation5 + $0x50] sm:$0xf]
    %v716 = vld [vmem:[#allocation5 + $0x54] sm:$0xf]
    %v717 = vld [vmem:[#allocation5 + $0x58] sm:$0xf]
    %v718 = vld [vmem:[#allocation5 + $0x5c] sm:$0xf]
    %v719 = vld [vmem:[#allocation5 + $0x60] sm:$0xf]
    %v720 = vld [vmem:[#allocation5 + $0x64] sm:$0xf]
    %v721 = vld [vmem:[#allocation5 + $0x68] sm:$0xf]
    %v722 = vld [vmem:[#allocation5 + $0x6c] sm:$0xf]
    %v723 = vld [vmem:[#allocation5 + $0x70] sm:$0xf]
    %v724 = vld [vmem:[#allocation5 + $0x74] sm:$0xf]
    %v725 = vld [vmem:[#allocation5 + $0x78] sm:$0xf]
    %v726 = vld [vmem:[#allocation5 + $0x7c] sm:$0xf]
    %v727 = vld [vmem:[#allocation5 + $0x80] sm:$0xf]
    %v728 = vld [vmem:[#allocation5 + $0x84] sm:$0xf]
    %v729 = vld [vmem:[#allocation5 + $0x88] sm:$0xf]
    %v730 = vld [vmem:[#allocation5 + $0x8c] sm:$0xf]
    %v731 = vld [vmem:[#allocation5 + $0x90] sm:$0xf]
    %v732 = vld [vmem:[#allocation5 + $0x94] sm:$0xf]
    %v733 = vld [vmem:[#allocation5 + $0x98] sm:$0xf]
    %v734 = vld [vmem:[#allocation5 + $0x9c] sm:$0xf]
    %v735 = vld [vmem:[#allocation5 + $0xa0] sm:$0xf]
    %v736 = vld [vmem:[#allocation5 + $0xa4] sm:$0xf]
    %v737 = vld [vmem:[#allocation5 + $0xa8] sm:$0xf]
    %v738 = vld [vmem:[#allocation5 + $0xac] sm:$0xf]
    %v739 = vld [vmem:[#allocation5 + $0xb0] sm:$0xf]
    %v740 = vld [vmem:[#allocation5 + $0xb4] sm:$0xf]
    %v741 = vld [vmem:[#allocation5 + $0xb8] sm:$0xf]
    %v742 = vld [vmem:[#allocation5 + $0xbc] sm:$0xf]
    %v743 = vld [vmem:[#allocation5 + $0xc0] sm:$0xf]
    %v744 = vld [vmem:[#allocation5 + $0xc4] sm:$0xf]
    %v745 = vld [vmem:[#allocation5 + $0xc8] sm:$0xf]
    %v746 = vld [vmem:[#allocation5 + $0xcc] sm:$0xf]
    %v747 = vld [vmem:[#allocation5 + $0xd0] sm:$0xf]
    %v748 = vld [vmem:[#allocation5 + $0xd4] sm:$0xf]
    %v749 = vld [vmem:[#allocation5 + $0xd8] sm:$0xf]
    %v750 = vld [vmem:[#allocation5 + $0xdc] sm:$0xf]
    %v751 = vld [vmem:[#allocation5 + $0xe0] sm:$0xf]
    %v752 = vld [vmem:[#allocation5 + $0xe4] sm:$0xf]
    %v753 = vld [vmem:[#allocation5 + $0xe8] sm:$0xf]
    %v754 = vld [vmem:[#allocation5 + $0xec] sm:$0xf]
    %v755 = vld [vmem:[#allocation5 + $0xf0] sm:$0xf]
    %v756 = vld [vmem:[#allocation5 + $0xf4] sm:$0xf]
    %v757 = vld [vmem:[#allocation5 + $0xf8] sm:$0xf]
    %v758 = vld [vmem:[#allocation5 + $0xfc] sm:$0xf]
    %v759 = vld [vmem:[%s10] sm:$0x1]
    %v761 = vlaneseq
    %v762 = vshrl.u32 %v761, 7
    %v763 = vsub.s32 0, %v762
    %v764 = vrot.slane %v759, %v763
    %v830 = vunpack.c.l.b16 %v695
    %v831 = vunpack.c.l.b16 %v696
    %v832 = vunpack.c.l.b16 %v697
    %v833 = vunpack.c.l.b16 %v698
    %v834 = vunpack.c.l.b16 %v699
    %v835 = vunpack.c.l.b16 %v700
    %v836 = vunpack.c.l.b16 %v701
    %v837 = vunpack.c.l.b16 %v702
    %v838 = vunpack.c.l.b16 %v703
    %v839 = vunpack.c.l.b16 %v704
    %v840 = vunpack.c.l.b16 %v705
    %v841 = vunpack.c.l.b16 %v706
    %v842 = vunpack.c.l.b16 %v707
    %v843 = vunpack.c.l.b16 %v708
    %v844 = vunpack.c.l.b16 %v709
    %v845 = vunpack.c.l.b16 %v710
    %v846 = vunpack.c.l.b16 %v711
    %v847 = vunpack.c.l.b16 %v712
    %v848 = vunpack.c.l.b16 %v713
    %v849 = vunpack.c.l.b16 %v714
    %v850 = vunpack.c.l.b16 %v715
    %v851 = vunpack.c.l.b16 %v716
    %v852 = vunpack.c.l.b16 %v717
    %v853 = vunpack.c.l.b16 %v718
    %v854 = vunpack.c.l.b16 %v719
    %v855 = vunpack.c.l.b16 %v720
    %v856 = vunpack.c.l.b16 %v721
    %v857 = vunpack.c.l.b16 %v722
    %v858 = vunpack.c.l.b16 %v723
    %v859 = vunpack.c.l.b16 %v724
    %v860 = vunpack.c.l.b16 %v725
    %v861 = vunpack.c.l.b16 %v726
    %v862 = vunpack.c.l.b16 %v727
    %v863 = vunpack.c.l.b16 %v728
    %v864 = vunpack.c.l.b16 %v729
    %v865 = vunpack.c.l.b16 %v730
    %v866 = vunpack.c.l.b16 %v731
    %v867 = vunpack.c.l.b16 %v732
    %v868 = vunpack.c.l.b16 %v733
    %v869 = vunpack.c.l.b16 %v734
    %v870 = vunpack.c.l.b16 %v735
    %v871 = vunpack.c.l.b16 %v736
    %v872 = vunpack.c.l.b16 %v737
    %v873 = vunpack.c.l.b16 %v738
    %v874 = vunpack.c.l.b16 %v739
    %v875 = vunpack.c.l.b16 %v740
    %v876 = vunpack.c.l.b16 %v741
    %v877 = vunpack.c.l.b16 %v742
    %v878 = vunpack.c.l.b16 %v743
    %v879 = vunpack.c.l.b16 %v744
    %v880 = vunpack.c.l.b16 %v745
    %v881 = vunpack.c.l.b16 %v746
    %v882 = vunpack.c.l.b16 %v747
    %v883 = vunpack.c.l.b16 %v748
    %v884 = vunpack.c.l.b16 %v749
    %v885 = vunpack.c.l.b16 %v750
    %v886 = vunpack.c.l.b16 %v751
    %v887 = vunpack.c.l.b16 %v752
    %v888 = vunpack.c.l.b16 %v753
    %v889 = vunpack.c.l.b16 %v754
    %v890 = vunpack.c.l.b16 %v755
    %v891 = vunpack.c.l.b16 %v756
    %v892 = vunpack.c.l.b16 %v757
    %v893 = vunpack.c.l.b16 %v758
    %v894 = vpack.c.b16 %v831, %v830
    %v895 = vpack.c.b16 %v833, %v832
    %v896 = vpack.c.b16 %v835, %v834
    %v897 = vpack.c.b16 %v837, %v836
    %v898 = vpack.c.b16 %v839, %v838
    %v899 = vpack.c.b16 %v841, %v840
    %v900 = vpack.c.b16 %v843, %v842
    %v901 = vpack.c.b16 %v845, %v844
    %v902 = vpack.c.b16 %v847, %v846
    %v903 = vpack.c.b16 %v849, %v848
    %v904 = vpack.c.b16 %v851, %v850
    %v905 = vpack.c.b16 %v853, %v852
    %v906 = vpack.c.b16 %v855, %v854
    %v907 = vpack.c.b16 %v857, %v856
    %v908 = vpack.c.b16 %v859, %v858
    %v909 = vpack.c.b16 %v861, %v860
    %v910 = vpack.c.b16 %v863, %v862
    %v911 = vpack.c.b16 %v865, %v864
    %v912 = vpack.c.b16 %v867, %v866
    %v913 = vpack.c.b16 %v869, %v868
    %v914 = vpack.c.b16 %v871, %v870
    %v915 = vpack.c.b16 %v873, %v872
    %v916 = vpack.c.b16 %v875, %v874
    %v917 = vpack.c.b16 %v877, %v876
    %v918 = vpack.c.b16 %v879, %v878
    %v919 = vpack.c.b16 %v881, %v880
    %v920 = vpack.c.b16 %v883, %v882
    %v921 = vpack.c.b16 %v885, %v884
    %v922 = vpack.c.b16 %v887, %v886
    %v923 = vpack.c.b16 %v889, %v888
    %v924 = vpack.c.b16 %v891, %v890
    %v925 = vpack.c.b16 %v893, %v892
    %958 = vmatprep.subr.bf16.mxu0 0
    %959 = vmatpush1.bf16.msra.mxu0 %v901
    %960 = vmatprep.subr.bf16.mxu0 0
    %961 = vmatpush1.bf16.msra.mxu0 %v900
    %962 = vmatprep.subr.bf16.mxu0 0
    %963 = vmatpush1.bf16.msra.mxu0 %v899
    %964 = vmatprep.subr.bf16.mxu0 0
    %965 = vmatpush1.bf16.msra.mxu0 %v898
    %966 = vmatprep.subr.bf16.mxu0 0
    %967 = vmatpush1.bf16.msra.mxu0 %v897
    %968 = vmatprep.subr.bf16.mxu0 0
    %969 = vmatpush1.bf16.msra.mxu0 %v896
    %970 = vmatprep.subr.bf16.mxu0 0
    %971 = vmatpush1.bf16.msra.mxu0 %v895
    %972 = vmatprep.subr.bf16.mxu0 0
    %973 = vmatpush1.bf16.msra.mxu0 %v894
    %974 = vmatprep.subr.bf16.mxu0 0
    %975 = vmatpush2.bf16.msra.mxu0 %v909
    %976 = vmatprep.subr.bf16.mxu0 0
    %977 = vmatpush2.bf16.msra.mxu0 %v908
    %978 = vmatprep.subr.bf16.mxu0 0
    %979 = vmatpush2.bf16.msra.mxu0 %v907
    %980 = vmatprep.subr.bf16.mxu0 0
    %981 = vmatpush2.bf16.msra.mxu0 %v906
    %982 = vmatprep.subr.bf16.mxu0 0
    %983 = vmatpush2.bf16.msra.mxu0 %v905
    %984 = vmatprep.subr.bf16.mxu0 0
    %985 = vmatpush2.bf16.msra.mxu0 %v904
    %986 = vmatprep.subr.bf16.mxu0 0
    %987 = vmatpush2.bf16.msra.mxu0 %v903
    %988 = vmatprep.subr.bf16.mxu0 0
    %989 = vmatpush2.bf16.msra.mxu0 %v902
    %990 = vmatprep.mubr.bf16.mxu0 %v692
    %991 = vmatmul.mubr.bf16.gmra.mxu0 %v691
    %v992 = vpop.f32.mrf.mxu0
    %v993 = vadd.f32 %v764, %v992
    %v994 = vpop.f32.mrf.mxu0
    %v995 = vpop.f32.mrf.mxu0
    %v996 = vpop.f32.mrf.mxu0
    %997 = vdwg.mxu0
    %998 = vmatprep.subr.bf16.mxu0 0
    %999 = vmatpush1.bf16.msra.mxu0 %v917
    %1000 = vmatprep.subr.bf16.mxu0 0
    %1001 = vmatpush1.bf16.msra.mxu0 %v916
    %1002 = vmatprep.subr.bf16.mxu0 0
    %1003 = vmatpush1.bf16.msra.mxu0 %v915
    %1004 = vmatprep.subr.bf16.mxu0 0
    %1005 = vmatpush1.bf16.msra.mxu0 %v914
    %1006 = vmatprep.subr.bf16.mxu0 0
    %1007 = vmatpush1.bf16.msra.mxu0 %v913
    %1008 = vmatprep.subr.bf16.mxu0 0
    %1009 = vmatpush1.bf16.msra.mxu0 %v912
    %1010 = vmatprep.subr.bf16.mxu0 0
    %1011 = vmatpush1.bf16.msra.mxu0 %v911
    %1012 = vmatprep.subr.bf16.mxu0 0
    %1013 = vmatpush1.bf16.msra.mxu0 %v910
    %1014 = vmatprep.subr.bf16.mxu0 0
    %1015 = vmatpush2.bf16.msra.mxu0 %v925
    %1016 = vmatprep.subr.bf16.mxu0 0
    %1017 = vmatpush2.bf16.msra.mxu0 %v924
    %1018 = vmatprep.subr.bf16.mxu0 0
    %1019 = vmatpush2.bf16.msra.mxu0 %v923
    %1020 = vmatprep.subr.bf16.mxu0 0
    %1021 = vmatpush2.bf16.msra.mxu0 %v922
    %1022 = vmatprep.subr.bf16.mxu0 0
    %1023 = vmatpush2.bf16.msra.mxu0 %v921
    %1024 = vmatprep.subr.bf16.mxu0 0
    %1025 = vmatpush2.bf16.msra.mxu0 %v920
    %1026 = vmatprep.subr.bf16.mxu0 0
    %1027 = vmatpush2.bf16.msra.mxu0 %v919
    %1028 = vmatprep.subr.bf16.mxu0 0
    %1029 = vmatpush2.bf16.msra.mxu0 %v918
    %1030 = vmatprep.mubr.bf16.mxu0 %v694
    %1031 = vmatmul.mubr.bf16.gmra.mxu0 %v693
    %v1032 = vpop.f32.mrf.mxu0
    %v1033 = vadd.f32 %v993, %v1032
    %v1034 = vpop.f32.mrf.mxu0
    %v1035 = vpop.f32.mrf.mxu0
    %v1036 = vpop.f32.mrf.mxu0
    %1037 = vdwg.mxu0
    %v1038 = vmax.f32 %v1033, 0.0
    %v1039 = vpack.c.bf16 %v389, %v389
    %v1040 = vld [vmem:[#allocation7] sm:$0xff]
    %v1041 = vld [vmem:[#allocation7 + $0x8] sm:$0xff]
    %v1042 = vld [vmem:[#allocation7 + $0x10] sm:$0xff]
    %v1043 = vld [vmem:[#allocation7 + $0x18] sm:$0xff]
    %v1044 = vld [vmem:[#allocation7 + $0x20] sm:$0xff]
    %v1045 = vld [vmem:[#allocation7 + $0x28] sm:$0xff]
    %v1046 = vld [vmem:[#allocation7 + $0x30] sm:$0xff]
    %v1047 = vld [vmem:[#allocation7 + $0x38] sm:$0xff]
    %v1048 = vld [vmem:[#allocation7 + $0x40] sm:$0xff]
    %v1049 = vld [vmem:[#allocation7 + $0x48] sm:$0xff]
    %v1050 = vld [vmem:[#allocation7 + $0x50] sm:$0xff]
    %v1051 = vld [vmem:[#allocation7 + $0x58] sm:$0xff]
    %v1052 = vld [vmem:[#allocation7 + $0x60] sm:$0xff]
    %v1053 = vld [vmem:[#allocation7 + $0x68] sm:$0xff]
    %v1054 = vld [vmem:[#allocation7 + $0x70] sm:$0xff]
    %v1055 = vld [vmem:[#allocation7 + $0x78] sm:$0xff]
    %v1056 = vld [vmem:[%s12] sm:$0x3]
    %v1058 = vlaneseq
    %v1059 = vshrl.u32 %v1058, 7
    %v1060 = vsub.s32 0, %v1059
    %v1061 = vrot.slane %v1056, %v1060
    %v1062 = vlaneseq
    %v1063 = vshrl.u32 %v1062, 7
    %v1064 = vsub.s32 1, %v1063
    %v1065 = vrot.slane %v1056, %v1064
    %v1084 = vunpack.c.l.b16 %v1040
    %v1085 = vunpack.c.h.b16 %v1040
    %v1086 = vunpack.c.l.b16 %v1041
    %v1087 = vunpack.c.h.b16 %v1041
    %v1088 = vunpack.c.l.b16 %v1042
    %v1089 = vunpack.c.h.b16 %v1042
    %v1090 = vunpack.c.l.b16 %v1043
    %v1091 = vunpack.c.h.b16 %v1043
    %v1092 = vunpack.c.l.b16 %v1044
    %v1093 = vunpack.c.h.b16 %v1044
    %v1094 = vunpack.c.l.b16 %v1045
    %v1095 = vunpack.c.h.b16 %v1045
    %v1096 = vunpack.c.l.b16 %v1046
    %v1097 = vunpack.c.h.b16 %v1046
    %v1098 = vunpack.c.l.b16 %v1047
    %v1099 = vunpack.c.h.b16 %v1047
    %v1100 = vunpack.c.l.b16 %v1048
    %v1101 = vunpack.c.h.b16 %v1048
    %v1102 = vunpack.c.l.b16 %v1049
    %v1103 = vunpack.c.h.b16 %v1049
    %v1104 = vunpack.c.l.b16 %v1050
    %v1105 = vunpack.c.h.b16 %v1050
    %v1106 = vunpack.c.l.b16 %v1051
    %v1107 = vunpack.c.h.b16 %v1051
    %v1108 = vunpack.c.l.b16 %v1052
    %v1109 = vunpack.c.h.b16 %v1052
    %v1110 = vunpack.c.l.b16 %v1053
    %v1111 = vunpack.c.h.b16 %v1053
    %v1112 = vunpack.c.l.b16 %v1054
    %v1113 = vunpack.c.h.b16 %v1054
    %v1114 = vunpack.c.l.b16 %v1055
    %v1115 = vunpack.c.h.b16 %v1055
    %v1116 = vpack.c.b16 %v1086, %v1084
    %v1117 = vpack.c.b16 %v1087, %v1085
    %v1118 = vpack.c.b16 %v1090, %v1088
    %v1119 = vpack.c.b16 %v1091, %v1089
    %v1120 = vpack.c.b16 %v1094, %v1092
    %v1121 = vpack.c.b16 %v1095, %v1093
    %v1122 = vpack.c.b16 %v1098, %v1096
    %v1123 = vpack.c.b16 %v1099, %v1097
    %v1124 = vpack.c.b16 %v1102, %v1100
    %v1125 = vpack.c.b16 %v1103, %v1101
    %v1126 = vpack.c.b16 %v1106, %v1104
    %v1127 = vpack.c.b16 %v1107, %v1105
    %v1128 = vpack.c.b16 %v1110, %v1108
    %v1129 = vpack.c.b16 %v1111, %v1109
    %v1130 = vpack.c.b16 %v1114, %v1112
    %v1131 = vpack.c.b16 %v1115, %v1113
    %1148 = vmatprep.subr.bf16.mxu0 %v1131
    %1149 = vmatpush1.bf16.msra.mxu0 %v1130
    %1150 = vmatprep.subr.bf16.mxu0 %v1129
    %1151 = vmatpush1.bf16.msra.mxu0 %v1128
    %1152 = vmatprep.subr.bf16.mxu0 %v1127
    %1153 = vmatpush1.bf16.msra.mxu0 %v1126
    %1154 = vmatprep.subr.bf16.mxu0 %v1125
    %1155 = vmatpush1.bf16.msra.mxu0 %v1124
    %1156 = vmatprep.subr.bf16.mxu0 %v1123
    %1157 = vmatpush1.bf16.msra.mxu0 %v1122
    %1158 = vmatprep.subr.bf16.mxu0 %v1121
    %1159 = vmatpush1.bf16.msra.mxu0 %v1120
    %1160 = vmatprep.subr.bf16.mxu0 %v1119
    %1161 = vmatpush1.bf16.msra.mxu0 %v1118
    %1162 = vmatprep.subr.bf16.mxu0 %v1117
    %1163 = vmatpush1.bf16.msra.mxu0 %v1116
    %1164 = vmatprep.subr.bf16.mxu0 0
    %1165 = vmatpush2.bf16.msra.mxu0 0
    %1166 = vmatprep.subr.bf16.mxu0 0
    %1167 = vmatpush2.bf16.msra.mxu0 0
    %1168 = vmatprep.subr.bf16.mxu0 0
    %1169 = vmatpush2.bf16.msra.mxu0 0
    %1170 = vmatprep.subr.bf16.mxu0 0
    %1171 = vmatpush2.bf16.msra.mxu0 0
    %1172 = vmatprep.subr.bf16.mxu0 0
    %1173 = vmatpush2.bf16.msra.mxu0 0
    %1174 = vmatprep.subr.bf16.mxu0 0
    %1175 = vmatpush2.bf16.msra.mxu0 0
    %1176 = vmatprep.subr.bf16.mxu0 0
    %1177 = vmatpush2.bf16.msra.mxu0 0
    %1178 = vmatprep.subr.bf16.mxu0 0
    %1179 = vmatpush2.bf16.msra.mxu0 0
    %1180 = vmatprep.mubr.bf16.mxu0 0
    %1181 = vmatmul.mubr.bf16.gmra.mxu0 %v1039
    %v1182 = vpop.f32.mrf.mxu0
    %v1183 = vadd.f32 %v1061, %v1182
    %v1184 = vpop.f32.mrf.mxu0
    %v1185 = vadd.f32 %v1065, %v1184
    %v1186 = vpop.f32.mrf.mxu0
    %v1187 = vpop.f32.mrf.mxu0
    %1188 = vdwg.mxu0
    %v1189 = vmax.f32 %v1183, 0.0
    %v1190 = vmax.f32 %v1185, 0.0
    %v1191 = vpack.c.bf16 %v1189, %v1189
    %v1192 = vpack.c.bf16 %v1190, %v1190
    %v1193 = vld [vmem:[#allocation8] sm:$0xff]
    %v1194 = vld [vmem:[#allocation8 + $0x8] sm:$0xff]
    %v1195 = vld [vmem:[#allocation8 + $0x10] sm:$0xff]
    %v1196 = vld [vmem:[#allocation8 + $0x18] sm:$0xff]
    %v1197 = vld [vmem:[#allocation8 + $0x20] sm:$0xff]
    %v1198 = vld [vmem:[#allocation8 + $0x28] sm:$0xff]
    %v1199 = vld [vmem:[#allocation8 + $0x30] sm:$0xff]
    %v1200 = vld [vmem:[#allocation8 + $0x38] sm:$0xff]
    %v1201 = vld [vmem:[#allocation8 + $0x40] sm:$0xff]
    %v1202 = vld [vmem:[#allocation8 + $0x48] sm:$0xff]
    %v1203 = vld [vmem:[#allocation8 + $0x50] sm:$0xff]
    %v1204 = vld [vmem:[#allocation8 + $0x58] sm:$0xff]
    %v1205 = vld [vmem:[#allocation8 + $0x60] sm:$0xff]
    %v1206 = vld [vmem:[#allocation8 + $0x68] sm:$0xff]
    %v1207 = vld [vmem:[#allocation8 + $0x70] sm:$0xff]
    %v1208 = vld [vmem:[#allocation8 + $0x78] sm:$0xff]
    %v1209 = vld [vmem:[#allocation8 + $0x80] sm:$0xff]
    %v1210 = vld [vmem:[#allocation8 + $0x88] sm:$0xff]
    %v1211 = vld [vmem:[#allocation8 + $0x90] sm:$0xff]
    %v1212 = vld [vmem:[#allocation8 + $0x98] sm:$0xff]
    %v1213 = vld [vmem:[#allocation8 + $0xa0] sm:$0xff]
    %v1214 = vld [vmem:[#allocation8 + $0xa8] sm:$0xff]
    %v1215 = vld [vmem:[#allocation8 + $0xb0] sm:$0xff]
    %v1216 = vld [vmem:[#allocation8 + $0xb8] sm:$0xff]
    %v1217 = vld [vmem:[#allocation8 + $0xc0] sm:$0xff]
    %v1218 = vld [vmem:[#allocation8 + $0xc8] sm:$0xff]
    %v1219 = vld [vmem:[#allocation8 + $0xd0] sm:$0xff]
    %v1220 = vld [vmem:[#allocation8 + $0xd8] sm:$0xff]
    %v1221 = vld [vmem:[#allocation8 + $0xe0] sm:$0xff]
    %v1222 = vld [vmem:[#allocation8 + $0xe8] sm:$0xff]
    %v1223 = vld [vmem:[#allocation8 + $0xf0] sm:$0xff]
    %v1224 = vld [vmem:[#allocation8 + $0xf8] sm:$0xff]
    %v1225 = vld [vmem:[%s14] sm:$0x3]
    %v1227 = vlaneseq
    %v1228 = vshrl.u32 %v1227, 7
    %v1229 = vsub.s32 0, %v1228
    %v1230 = vrot.slane %v1225, %v1229
    %v1231 = vlaneseq
    %v1232 = vshrl.u32 %v1231, 7
    %v1233 = vsub.s32 1, %v1232
    %v1234 = vrot.slane %v1225, %v1233
    %v1269 = vunpack.c.l.b16 %v1193
    %v1270 = vunpack.c.h.b16 %v1193
    %v1271 = vunpack.c.l.b16 %v1194
    %v1272 = vunpack.c.h.b16 %v1194
    %v1273 = vunpack.c.l.b16 %v1195
    %v1274 = vunpack.c.h.b16 %v1195
    %v1275 = vunpack.c.l.b16 %v1196
    %v1276 = vunpack.c.h.b16 %v1196
    %v1277 = vunpack.c.l.b16 %v1197
    %v1278 = vunpack.c.h.b16 %v1197
    %v1279 = vunpack.c.l.b16 %v1198
    %v1280 = vunpack.c.h.b16 %v1198
    %v1281 = vunpack.c.l.b16 %v1199
    %v1282 = vunpack.c.h.b16 %v1199
    %v1283 = vunpack.c.l.b16 %v1200
    %v1284 = vunpack.c.h.b16 %v1200
    %v1285 = vunpack.c.l.b16 %v1201
    %v1286 = vunpack.c.h.b16 %v1201
    %v1287 = vunpack.c.l.b16 %v1202
    %v1288 = vunpack.c.h.b16 %v1202
    %v1289 = vunpack.c.l.b16 %v1203
    %v1290 = vunpack.c.h.b16 %v1203
    %v1291 = vunpack.c.l.b16 %v1204
    %v1292 = vunpack.c.h.b16 %v1204
    %v1293 = vunpack.c.l.b16 %v1205
    %v1294 = vunpack.c.h.b16 %v1205
    %v1295 = vunpack.c.l.b16 %v1206
    %v1296 = vunpack.c.h.b16 %v1206
    %v1297 = vunpack.c.l.b16 %v1207
    %v1298 = vunpack.c.h.b16 %v1207
    %v1299 = vunpack.c.l.b16 %v1208
    %v1300 = vunpack.c.h.b16 %v1208
    %v1301 = vunpack.c.l.b16 %v1209
    %v1302 = vunpack.c.h.b16 %v1209
    %v1303 = vunpack.c.l.b16 %v1210
    %v1304 = vunpack.c.h.b16 %v1210
    %v1305 = vunpack.c.l.b16 %v1211
    %v1306 = vunpack.c.h.b16 %v1211
    %v1307 = vunpack.c.l.b16 %v1212
    %v1308 = vunpack.c.h.b16 %v1212
    %v1309 = vunpack.c.l.b16 %v1213
    %v1310 = vunpack.c.h.b16 %v1213
    %v1311 = vunpack.c.l.b16 %v1214
    %v1312 = vunpack.c.h.b16 %v1214
    %v1313 = vunpack.c.l.b16 %v1215
    %v1314 = vunpack.c.h.b16 %v1215
    %v1315 = vunpack.c.l.b16 %v1216
    %v1316 = vunpack.c.h.b16 %v1216
    %v1317 = vunpack.c.l.b16 %v1217
    %v1318 = vunpack.c.h.b16 %v1217
    %v1319 = vunpack.c.l.b16 %v1218
    %v1320 = vunpack.c.h.b16 %v1218
    %v1321 = vunpack.c.l.b16 %v1219
    %v1322 = vunpack.c.h.b16 %v1219
    %v1323 = vunpack.c.l.b16 %v1220
    %v1324 = vunpack.c.h.b16 %v1220
    %v1325 = vunpack.c.l.b16 %v1221
    %v1326 = vunpack.c.h.b16 %v1221
    %v1327 = vunpack.c.l.b16 %v1222
    %v1328 = vunpack.c.h.b16 %v1222
    %v1329 = vunpack.c.l.b16 %v1223
    %v1330 = vunpack.c.h.b16 %v1223
    %v1331 = vunpack.c.l.b16 %v1224
    %v1332 = vunpack.c.h.b16 %v1224
    %v1333 = vpack.c.b16 %v1271, %v1269
    %v1334 = vpack.c.b16 %v1272, %v1270
    %v1335 = vpack.c.b16 %v1275, %v1273
    %v1336 = vpack.c.b16 %v1276, %v1274
    %v1337 = vpack.c.b16 %v1279, %v1277
    %v1338 = vpack.c.b16 %v1280, %v1278
    %v1339 = vpack.c.b16 %v1283, %v1281
    %v1340 = vpack.c.b16 %v1284, %v1282
    %v1341 = vpack.c.b16 %v1287, %v1285
    %v1342 = vpack.c.b16 %v1288, %v1286
    %v1343 = vpack.c.b16 %v1291, %v1289
    %v1344 = vpack.c.b16 %v1292, %v1290
    %v1345 = vpack.c.b16 %v1295, %v1293
    %v1346 = vpack.c.b16 %v1296, %v1294
    %v1347 = vpack.c.b16 %v1299, %v1297
    %v1348 = vpack.c.b16 %v1300, %v1298
    %v1349 = vpack.c.b16 %v1303, %v1301
    %v1350 = vpack.c.b16 %v1304, %v1302
    %v1351 = vpack.c.b16 %v1307, %v1305
    %v1352 = vpack.c.b16 %v1308, %v1306
    %v1353 = vpack.c.b16 %v1311, %v1309
    %v1354 = vpack.c.b16 %v1312, %v1310
    %v1355 = vpack.c.b16 %v1315, %v1313
    %v1356 = vpack.c.b16 %v1316, %v1314
    %v1357 = vpack.c.b16 %v1319, %v1317
    %v1358 = vpack.c.b16 %v1320, %v1318
    %v1359 = vpack.c.b16 %v1323, %v1321
    %v1360 = vpack.c.b16 %v1324, %v1322
    %v1361 = vpack.c.b16 %v1327, %v1325
    %v1362 = vpack.c.b16 %v1328, %v1326
    %v1363 = vpack.c.b16 %v1331, %v1329
    %v1364 = vpack.c.b16 %v1332, %v1330
    %1397 = vmatprep.subr.bf16.mxu0 %v1348
    %1398 = vmatpush1.bf16.msra.mxu0 %v1347
    %1399 = vmatprep.subr.bf16.mxu0 %v1346
    %1400 = vmatpush1.bf16.msra.mxu0 %v1345
    %1401 = vmatprep.subr.bf16.mxu0 %v1344
    %1402 = vmatpush1.bf16.msra.mxu0 %v1343
    %1403 = vmatprep.subr.bf16.mxu0 %v1342
    %1404 = vmatpush1.bf16.msra.mxu0 %v1341
    %1405 = vmatprep.subr.bf16.mxu0 %v1340
    %1406 = vmatpush1.bf16.msra.mxu0 %v1339
    %1407 = vmatprep.subr.bf16.mxu0 %v1338
    %1408 = vmatpush1.bf16.msra.mxu0 %v1337
    %1409 = vmatprep.subr.bf16.mxu0 %v1336
    %1410 = vmatpush1.bf16.msra.mxu0 %v1335
    %1411 = vmatprep.subr.bf16.mxu0 %v1334
    %1412 = vmatpush1.bf16.msra.mxu0 %v1333
    %1413 = vmatprep.subr.bf16.mxu0 %v1364
    %1414 = vmatpush2.bf16.msra.mxu0 %v1363
    %1415 = vmatprep.subr.bf16.mxu0 %v1362
    %1416 = vmatpush2.bf16.msra.mxu0 %v1361
    %1417 = vmatprep.subr.bf16.mxu0 %v1360
    %1418 = vmatpush2.bf16.msra.mxu0 %v1359
    %1419 = vmatprep.subr.bf16.mxu0 %v1358
    %1420 = vmatpush2.bf16.msra.mxu0 %v1357
    %1421 = vmatprep.subr.bf16.mxu0 %v1356
    %1422 = vmatpush2.bf16.msra.mxu0 %v1355
    %1423 = vmatprep.subr.bf16.mxu0 %v1354
    %1424 = vmatpush2.bf16.msra.mxu0 %v1353
    %1425 = vmatprep.subr.bf16.mxu0 %v1352
    %1426 = vmatpush2.bf16.msra.mxu0 %v1351
    %1427 = vmatprep.subr.bf16.mxu0 %v1350
    %1428 = vmatpush2.bf16.msra.mxu0 %v1349
    %1429 = vmatprep.mubr.bf16.mxu0 %v1192
    %1430 = vmatmul.mubr.bf16.gmra.mxu0 %v1191
    %v1431 = vpop.f32.mrf.mxu0
    %v1432 = vadd.f32 %v1230, %v1431
    %v1433 = vpop.f32.mrf.mxu0
    %v1434 = vadd.f32 %v1234, %v1433
    %v1435 = vpop.f32.mrf.mxu0
    %v1436 = vpop.f32.mrf.mxu0
    %1437 = vdwg.mxu0
    %v1438 = vmax.f32 %v1432, 0.0
    %v1439 = vmax.f32 %v1434, 0.0
    %v1440 = vadd.f32 %v1438, %v1189
    %v1441 = vadd.f32 %v1439, %v1190
    %v1442 = vpack.c.bf16 %v162, %v162
    %v1443 = vld [vmem:[%s17] sm:$0x3]
    %vm1444 = vcmask 31744
    %v1446 = vsel %vm1444, %v1442, 0
    %v1449 = vsel %vm163, %v1443, 0
    %1451 = vmatprep.subr.bf16.mxu0 0
    %1452 = vmatpush1.bf16.msra.mxu0 0
    %1453 = vmatprep.subr.bf16.mxu0 0
    %1454 = vmatpush1.bf16.msra.mxu0 0
    %1455 = vmatprep.subr.bf16.mxu0 0
    %1456 = vmatpush1.bf16.msra.mxu0 0
    %1457 = vmatprep.subr.bf16.mxu0 0
    %1458 = vmatpush1.bf16.msra.mxu0 0
    %1459 = vmatprep.subr.bf16.mxu0 0
    %1460 = vmatpush1.bf16.msra.mxu0 0
    %1461 = vmatprep.subr.bf16.mxu0 0
    %1462 = vmatpush1.bf16.msra.mxu0 0
    %1463 = vmatprep.subr.bf16.mxu0 0
    %1464 = vmatpush1.bf16.msra.mxu0 0
    %1465 = vmatprep.subr.bf16.mxu0 0
    %1466 = vmatpush1.bf16.msra.mxu0 %v1449
    %1467 = vmatprep.subr.bf16.mxu0 0
    %1468 = vmatpush2.bf16.msra.mxu0 0
    %1469 = vmatprep.subr.bf16.mxu0 0
    %1470 = vmatpush2.bf16.msra.mxu0 0
    %1471 = vmatprep.subr.bf16.mxu0 0
    %1472 = vmatpush2.bf16.msra.mxu0 0
    %1473 = vmatprep.subr.bf16.mxu0 0
    %1474 = vmatpush2.bf16.msra.mxu0 0
    %1475 = vmatprep.subr.bf16.mxu0 0
    %1476 = vmatpush2.bf16.msra.mxu0 0
    %1477 = vmatprep.subr.bf16.mxu0 0
    %1478 = vmatpush2.bf16.msra.mxu0 0
    %1479 = vmatprep.subr.bf16.mxu0 0
    %1480 = vmatpush2.bf16.msra.mxu0 0
    %1481 = vmatprep.subr.bf16.mxu0 0
    %1482 = vmatpush2.bf16.msra.mxu0 0
    %1483 = vmatprep.mubr.bf16.mxu0 0
    %1484 = vmatmul.mubr.bf16.gmra.mxu0 %v1446
    %v1485 = vpop.f32.mrf.mxu0
    %v1486 = vadd.f32 0.0, %v1485
    %v1487 = vpop.f32.mrf.mxu0
    %v1488 = vpop.f32.mrf.mxu0
    %v1489 = vpop.f32.mrf.mxu0
    %1490 = vdwg.mxu0
    %v1491 = vpack.c.bf16 %v1440, %v1440
    %v1492 = vpack.c.bf16 %v1441, %v1441
    %v1493 = vld [vmem:[%s15] sm:$0xf]
    %v1494 = vld [vmem:[%s15 + $0x4] sm:$0xf]
    %v1495 = vld [vmem:[%s15 + $0x8] sm:$0xf]
    %v1496 = vld [vmem:[%s15 + $0xc] sm:$0xf]
    %v1497 = vld [vmem:[%s15 + $0x10] sm:$0xf]
    %v1498 = vld [vmem:[%s15 + $0x14] sm:$0xf]
    %v1499 = vld [vmem:[%s15 + $0x18] sm:$0xf]
    %v1500 = vld [vmem:[%s15 + $0x1c] sm:$0xf]
    %v1501 = vld [vmem:[%s15 + $0x20] sm:$0xf]
    %v1502 = vld [vmem:[%s15 + $0x24] sm:$0xf]
    %v1503 = vld [vmem:[%s15 + $0x28] sm:$0xf]
    %v1504 = vld [vmem:[%s15 + $0x2c] sm:$0xf]
    %v1505 = vld [vmem:[%s15 + $0x30] sm:$0xf]
    %v1506 = vld [vmem:[%s15 + $0x34] sm:$0xf]
    %v1507 = vld [vmem:[%s15 + $0x38] sm:$0xf]
    %v1508 = vld [vmem:[%s15 + $0x3c] sm:$0xf]
    %v1509 = vld [vmem:[%s15 + $0x40] sm:$0xf]
    %v1510 = vld [vmem:[%s15 + $0x44] sm:$0xf]
    %v1511 = vld [vmem:[%s15 + $0x48] sm:$0xf]
    %v1512 = vld [vmem:[%s15 + $0x4c] sm:$0xf]
    %v1513 = vld [vmem:[%s15 + $0x50] sm:$0xf]
    %v1514 = vld [vmem:[%s15 + $0x54] sm:$0xf]
    %v1515 = vld [vmem:[%s15 + $0x58] sm:$0xf]
    %v1516 = vld [vmem:[%s15 + $0x5c] sm:$0xf]
    %v1517 = vld [vmem:[%s15 + $0x60] sm:$0xf]
    %v1518 = vld [vmem:[%s15 + $0x64] sm:$0xf]
    %v1519 = vld [vmem:[%s15 + $0x68] sm:$0xf]
    %v1520 = vld [vmem:[%s15 + $0x6c] sm:$0xf]
    %v1521 = vld [vmem:[%s15 + $0x70] sm:$0xf]
    %v1522 = vld [vmem:[%s15 + $0x74] sm:$0xf]
    %v1523 = vld [vmem:[%s15 + $0x78] sm:$0xf]
    %v1524 = vld [vmem:[%s15 + $0x7c] sm:$0xf]
    %v1525 = vld [vmem:[%s16] sm:$0x1]
    %v1527 = vlaneseq
    %v1528 = vshrl.u32 %v1527, 7
    %v1529 = vsub.s32 0, %v1528
    %v1530 = vrot.slane %v1525, %v1529
    %v1564 = vunpack.c.l.b16 %v1493
    %v1565 = vunpack.c.l.b16 %v1494
    %v1566 = vunpack.c.l.b16 %v1495
    %v1567 = vunpack.c.l.b16 %v1496
    %v1568 = vunpack.c.l.b16 %v1497
    %v1569 = vunpack.c.l.b16 %v1498
    %v1570 = vunpack.c.l.b16 %v1499
    %v1571 = vunpack.c.l.b16 %v1500
    %v1572 = vunpack.c.l.b16 %v1501
    %v1573 = vunpack.c.l.b16 %v1502
    %v1574 = vunpack.c.l.b16 %v1503
    %v1575 = vunpack.c.l.b16 %v1504
    %v1576 = vunpack.c.l.b16 %v1505
    %v1577 = vunpack.c.l.b16 %v1506
    %v1578 = vunpack.c.l.b16 %v1507
    %v1579 = vunpack.c.l.b16 %v1508
    %v1580 = vunpack.c.l.b16 %v1509
    %v1581 = vunpack.c.l.b16 %v1510
    %v1582 = vunpack.c.l.b16 %v1511
    %v1583 = vunpack.c.l.b16 %v1512
    %v1584 = vunpack.c.l.b16 %v1513
    %v1585 = vunpack.c.l.b16 %v1514
    %v1586 = vunpack.c.l.b16 %v1515
    %v1587 = vunpack.c.l.b16 %v1516
    %v1588 = vunpack.c.l.b16 %v1517
    %v1589 = vunpack.c.l.b16 %v1518
    %v1590 = vunpack.c.l.b16 %v1519
    %v1591 = vunpack.c.l.b16 %v1520
    %v1592 = vunpack.c.l.b16 %v1521
    %v1593 = vunpack.c.l.b16 %v1522
    %v1594 = vunpack.c.l.b16 %v1523
    %v1595 = vunpack.c.l.b16 %v1524
    %v1596 = vpack.c.b16 %v1565, %v1564
    %v1597 = vpack.c.b16 %v1567, %v1566
    %v1598 = vpack.c.b16 %v1569, %v1568
    %v1599 = vpack.c.b16 %v1571, %v1570
    %v1600 = vpack.c.b16 %v1573, %v1572
    %v1601 = vpack.c.b16 %v1575, %v1574
    %v1602 = vpack.c.b16 %v1577, %v1576
    %v1603 = vpack.c.b16 %v1579, %v1578
    %v1604 = vpack.c.b16 %v1581, %v1580
    %v1605 = vpack.c.b16 %v1583, %v1582
    %v1606 = vpack.c.b16 %v1585, %v1584
    %v1607 = vpack.c.b16 %v1587, %v1586
    %v1608 = vpack.c.b16 %v1589, %v1588
    %v1609 = vpack.c.b16 %v1591, %v1590
    %v1610 = vpack.c.b16 %v1593, %v1592
    %v1611 = vpack.c.b16 %v1595, %v1594
    %1628 = vmatprep.subr.bf16.mxu0 0
    %1629 = vmatpush1.bf16.msra.mxu0 %v1603
    %1630 = vmatprep.subr.bf16.mxu0 0
    %1631 = vmatpush1.bf16.msra.mxu0 %v1602
    %1632 = vmatprep.subr.bf16.mxu0 0
    %1633 = vmatpush1.bf16.msra.mxu0 %v1601
    %1634 = vmatprep.subr.bf16.mxu0 0
    %1635 = vmatpush1.bf16.msra.mxu0 %v1600
    %1636 = vmatprep.subr.bf16.mxu0 0
    %1637 = vmatpush1.bf16.msra.mxu0 %v1599
    %1638 = vmatprep.subr.bf16.mxu0 0
    %1639 = vmatpush1.bf16.msra.mxu0 %v1598
    %1640 = vmatprep.subr.bf16.mxu0 0
    %1641 = vmatpush1.bf16.msra.mxu0 %v1597
    %1642 = vmatprep.subr.bf16.mxu0 0
    %1643 = vmatpush1.bf16.msra.mxu0 %v1596
    %1644 = vmatprep.subr.bf16.mxu0 0
    %1645 = vmatpush2.bf16.msra.mxu0 %v1611
    %1646 = vmatprep.subr.bf16.mxu0 0
    %1647 = vmatpush2.bf16.msra.mxu0 %v1610
    %1648 = vmatprep.subr.bf16.mxu0 0
    %1649 = vmatpush2.bf16.msra.mxu0 %v1609
    %1650 = vmatprep.subr.bf16.mxu0 0
    %1651 = vmatpush2.bf16.msra.mxu0 %v1608
    %1652 = vmatprep.subr.bf16.mxu0 0
    %1653 = vmatpush2.bf16.msra.mxu0 %v1607
    %1654 = vmatprep.subr.bf16.mxu0 0
    %1655 = vmatpush2.bf16.msra.mxu0 %v1606
    %1656 = vmatprep.subr.bf16.mxu0 0
    %1657 = vmatpush2.bf16.msra.mxu0 %v1605
    %1658 = vmatprep.subr.bf16.mxu0 0
    %1659 = vmatpush2.bf16.msra.mxu0 %v1604
    %1660 = vmatprep.mubr.bf16.mxu0 %v1492
    %1661 = vmatmul.mubr.bf16.gmra.mxu0 %v1491
    %v1662 = vpop.f32.mrf.mxu0
    %v1663 = vadd.f32 %v1530, %v1662
    %v1664 = vpop.f32.mrf.mxu0
    %v1665 = vpop.f32.mrf.mxu0
    %v1666 = vpop.f32.mrf.mxu0
    %1667 = vdwg.mxu0
    %v1668 = vmax.f32 %v1663, 0.0
    %1670 = vrot.lane.b32.xlu0 %v1486, 32
    %v1671 = vpop.permute.xlu0 %1670
    %v1673 = vadd.f32 %v1663, %v1671
    %v1674 = vsub.f32 0.0, %v1673
    %v1675 = vmul.f32 %v1674, 1.442695
    %v1676 = vpow.pop %v1675
    %v1677 = vadd.f32 %v1676, 1.0
    %v1678 = vrcp.pop %v1677
    %v1679 = vpack.c.bf16 %v1038, %v1038
    %v1680 = vld [vmem:[%s18] sm:$0xf]
    %v1681 = vld [vmem:[%s18 + $0x4] sm:$0xf]
    %v1682 = vld [vmem:[%s18 + $0x8] sm:$0xf]
    %v1683 = vld [vmem:[%s18 + $0xc] sm:$0xf]
    %v1684 = vld [vmem:[%s18 + $0x10] sm:$0xf]
    %v1685 = vld [vmem:[%s18 + $0x14] sm:$0xf]
    %v1686 = vld [vmem:[%s18 + $0x18] sm:$0xf]
    %v1687 = vld [vmem:[%s18 + $0x1c] sm:$0xf]
    %v1688 = vld [vmem:[%s18 + $0x20] sm:$0xf]
    %v1689 = vld [vmem:[%s18 + $0x24] sm:$0xf]
    %v1690 = vld [vmem:[%s18 + $0x28] sm:$0xf]
    %v1691 = vld [vmem:[%s18 + $0x2c] sm:$0xf]
    %v1692 = vld [vmem:[%s18 + $0x30] sm:$0xf]
    %v1693 = vld [vmem:[%s18 + $0x34] sm:$0xf]
    %v1694 = vld [vmem:[%s18 + $0x38] sm:$0xf]
    %v1695 = vld [vmem:[%s18 + $0x3c] sm:$0xf]
    %v1696 = vpack.c.bf16 %v1668, %v1668
    %v1697 = vld [vmem:[%s19] sm:$0xf]
    %v1698 = vld [vmem:[%s19 + $0x4] sm:$0xf]
    %v1699 = vld [vmem:[%s19 + $0x8] sm:$0xf]
    %v1700 = vld [vmem:[%s19 + $0xc] sm:$0xf]
    %v1701 = vld [vmem:[%s19 + $0x10] sm:$0xf]
    %v1702 = vld [vmem:[%s19 + $0x14] sm:$0xf]
    %v1703 = vld [vmem:[%s19 + $0x18] sm:$0xf]
    %v1704 = vld [vmem:[%s19 + $0x1c] sm:$0xf]
    %v1713 = vunpack.c.l.b16 %v1697
    %v1714 = vunpack.c.l.b16 %v1698
    %v1715 = vunpack.c.l.b16 %v1699
    %v1716 = vunpack.c.l.b16 %v1700
    %v1717 = vunpack.c.l.b16 %v1701
    %v1718 = vunpack.c.l.b16 %v1702
    %v1719 = vunpack.c.l.b16 %v1703
    %v1720 = vunpack.c.l.b16 %v1704
    %v1721 = vpack.c.b16 %v1714, %v1713
    %v1722 = vpack.c.b16 %v1716, %v1715
    %v1723 = vpack.c.b16 %v1718, %v1717
    %v1724 = vpack.c.b16 %v1720, %v1719
    %vm1729 = vcmask 523264
    %v1731 = vsel %vm1729, %v1696, 0
    %1733 = vmatprep.subr.bf16.mxu0 0
    %1734 = vmatpush1.bf16.msra.mxu0 0
    %1735 = vmatprep.subr.bf16.mxu0 0
    %1736 = vmatpush1.bf16.msra.mxu0 0
    %1737 = vmatprep.subr.bf16.mxu0 0
    %1738 = vmatpush1.bf16.msra.mxu0 0
    %1739 = vmatprep.subr.bf16.mxu0 0
    %1740 = vmatpush1.bf16.msra.mxu0 0
    %1741 = vmatprep.subr.bf16.mxu0 0
    %1742 = vmatpush1.bf16.msra.mxu0 %v1724
    %1743 = vmatprep.subr.bf16.mxu0 0
    %1744 = vmatpush1.bf16.msra.mxu0 %v1723
    %1745 = vmatprep.subr.bf16.mxu0 0
    %1746 = vmatpush1.bf16.msra.mxu0 %v1722
    %1747 = vmatprep.subr.bf16.mxu0 0
    %1748 = vmatpush1.bf16.msra.mxu0 %v1721
    %1749 = vmatprep.subr.bf16.mxu0 0
    %1750 = vmatpush2.bf16.msra.mxu0 0
    %1751 = vmatprep.subr.bf16.mxu0 0
    %1752 = vmatpush2.bf16.msra.mxu0 0
    %1753 = vmatprep.subr.bf16.mxu0 0
    %1754 = vmatpush2.bf16.msra.mxu0 0
    %1755 = vmatprep.subr.bf16.mxu0 0
    %1756 = vmatpush2.bf16.msra.mxu0 0
    %1757 = vmatprep.subr.bf16.mxu0 0
    %1758 = vmatpush2.bf16.msra.mxu0 0
    %1759 = vmatprep.subr.bf16.mxu0 0
    %1760 = vmatpush2.bf16.msra.mxu0 0
    %1761 = vmatprep.subr.bf16.mxu0 0
    %1762 = vmatpush2.bf16.msra.mxu0 0
    %1763 = vmatprep.subr.bf16.mxu0 0
    %1764 = vmatpush2.bf16.msra.mxu0 0
    %1765 = vmatprep.mubr.bf16.mxu0 0
    %1766 = vmatmul.mubr.bf16.gmra.mxu0 %v1731
    %v1767 = vpop.f32.mrf.mxu0
    %v1768 = vadd.f32 0.0, %v1767
    %v1769 = vpop.f32.mrf.mxu0
    %v1770 = vpop.f32.mrf.mxu0
    %v1771 = vpop.f32.mrf.mxu0
    %1772 = vdwg.mxu0
    %v1789 = vunpack.c.l.b16 %v1680
    %v1790 = vunpack.c.l.b16 %v1681
    %v1791 = vunpack.c.l.b16 %v1682
    %v1792 = vunpack.c.l.b16 %v1683
    %v1793 = vunpack.c.l.b16 %v1684
    %v1794 = vunpack.c.l.b16 %v1685
    %v1795 = vunpack.c.l.b16 %v1686
    %v1796 = vunpack.c.l.b16 %v1687
    %v1797 = vunpack.c.l.b16 %v1688
    %v1798 = vunpack.c.l.b16 %v1689
    %v1799 = vunpack.c.l.b16 %v1690
    %v1800 = vunpack.c.l.b16 %v1691
    %v1801 = vunpack.c.l.b16 %v1692
    %v1802 = vunpack.c.l.b16 %v1693
    %v1803 = vunpack.c.l.b16 %v1694
    %v1804 = vunpack.c.l.b16 %v1695
    %v1805 = vpack.c.b16 %v1790, %v1789
    %v1806 = vpack.c.b16 %v1792, %v1791
    %v1807 = vpack.c.b16 %v1794, %v1793
    %v1808 = vpack.c.b16 %v1796, %v1795
    %v1809 = vpack.c.b16 %v1798, %v1797
    %v1810 = vpack.c.b16 %v1800, %v1799
    %v1811 = vpack.c.b16 %v1802, %v1801
    %v1812 = vpack.c.b16 %v1804, %v1803
    %1821 = vmatprep.subr.bf16.mxu0 0
    %1822 = vmatpush1.bf16.msra.mxu0 %v1812
    %1823 = vmatprep.subr.bf16.mxu0 0
    %1824 = vmatpush1.bf16.msra.mxu0 %v1811
    %1825 = vmatprep.subr.bf16.mxu0 0
    %1826 = vmatpush1.bf16.msra.mxu0 %v1810
    %1827 = vmatprep.subr.bf16.mxu0 0
    %1828 = vmatpush1.bf16.msra.mxu0 %v1809
    %1829 = vmatprep.subr.bf16.mxu0 0
    %1830 = vmatpush1.bf16.msra.mxu0 %v1808
    %1831 = vmatprep.subr.bf16.mxu0 0
    %1832 = vmatpush1.bf16.msra.mxu0 %v1807
    %1833 = vmatprep.subr.bf16.mxu0 0
    %1834 = vmatpush1.bf16.msra.mxu0 %v1806
    %1835 = vmatprep.subr.bf16.mxu0 0
    %1836 = vmatpush1.bf16.msra.mxu0 %v1805
    %1837 = vmatprep.subr.bf16.mxu0 0
    %1838 = vmatpush2.bf16.msra.mxu0 0
    %1839 = vmatprep.subr.bf16.mxu0 0
    %1840 = vmatpush2.bf16.msra.mxu0 0
    %1841 = vmatprep.subr.bf16.mxu0 0
    %1842 = vmatpush2.bf16.msra.mxu0 0
    %1843 = vmatprep.subr.bf16.mxu0 0
    %1844 = vmatpush2.bf16.msra.mxu0 0
    %1845 = vmatprep.subr.bf16.mxu0 0
    %1846 = vmatpush2.bf16.msra.mxu0 0
    %1847 = vmatprep.subr.bf16.mxu0 0
    %1848 = vmatpush2.bf16.msra.mxu0 0
    %1849 = vmatprep.subr.bf16.mxu0 0
    %1850 = vmatpush2.bf16.msra.mxu0 0
    %1851 = vmatprep.subr.bf16.mxu0 0
    %1852 = vmatpush2.bf16.msra.mxu0 0
    %1853 = vmatprep.mubr.bf16.mxu0 0
    %1854 = vmatmul.mubr.bf16.gmra.mxu0 %v1679
    %v1855 = vpop.f32.mrf.mxu0
    %v1856 = vadd.f32 %v1768, %v1855
    %v1857 = vpop.f32.mrf.mxu0
    %v1858 = vpop.f32.mrf.mxu0
    %v1859 = vpop.f32.mrf.mxu0
    %1860 = vdwg.mxu0
    %v1861 = vadd.f32 %v1856, %v1486
    %v1862 = vld [vmem:[#allocation10] sm:$0x1]
    %v1864 = vlaneseq
    %v1865 = vshrl.u32 %v1864, 7
    %v1866 = vsub.s32 0, %v1865
    %v1867 = vrot.slane %v1862, %v1866
    %v1869 = vadd.f32 %v1861, %v1867
    %v1870 = vmax.f32 %v1869, 0.0
    %v1871 = vpack.c.bf16 %v1870, %v1870
    %v1872 = vld [vmem:[%s21] sm:$0xf]
    %v1873 = vld [vmem:[%s21 + $0x4] sm:$0xf]
    %v1874 = vld [vmem:[%s21 + $0x8] sm:$0xf]
    %v1875 = vld [vmem:[%s21 + $0xc] sm:$0xf]
    %v1876 = vld [vmem:[#allocation11] sm:$0x1]
    %v1878 = vlaneseq
    %v1879 = vshrl.u32 %v1878, 7
    %v1880 = vsub.s32 0, %v1879
    %v1881 = vrot.slane %v1876, %v1880
    %v1887 = vunpack.c.l.b16 %v1872
    %v1888 = vunpack.c.l.b16 %v1873
    %v1889 = vunpack.c.l.b16 %v1874
    %v1890 = vunpack.c.l.b16 %v1875
    %v1891 = vpack.c.b16 %v1888, %v1887
    %v1892 = vpack.c.b16 %v1890, %v1889
    %vm1895 = vcmask 261120
    %v1897 = vsel %vm1895, %v1871, 0
    %1899 = vmatprep.subr.bf16.mxu0 0
    %1900 = vmatpush1.bf16.msra.mxu0 0
    %1901 = vmatprep.subr.bf16.mxu0 0
    %1902 = vmatpush1.bf16.msra.mxu0 0
    %1903 = vmatprep.subr.bf16.mxu0 0
    %1904 = vmatpush1.bf16.msra.mxu0 0
    %1905 = vmatprep.subr.bf16.mxu0 0
    %1906 = vmatpush1.bf16.msra.mxu0 0
    %1907 = vmatprep.subr.bf16.mxu0 0
    %1908 = vmatpush1.bf16.msra.mxu0 0
    %1909 = vmatprep.subr.bf16.mxu0 0
    %1910 = vmatpush1.bf16.msra.mxu0 0
    %1911 = vmatprep.subr.bf16.mxu0 0
    %1912 = vmatpush1.bf16.msra.mxu0 %v1892
    %1913 = vmatprep.subr.bf16.mxu0 0
    %1914 = vmatpush1.bf16.msra.mxu0 %v1891
    %1915 = vmatprep.subr.bf16.mxu0 0
    %1916 = vmatpush2.bf16.msra.mxu0 0
    %1917 = vmatprep.subr.bf16.mxu0 0
    %1918 = vmatpush2.bf16.msra.mxu0 0
    %1919 = vmatprep.subr.bf16.mxu0 0
    %1920 = vmatpush2.bf16.msra.mxu0 0
    %1921 = vmatprep.subr.bf16.mxu0 0
    %1922 = vmatpush2.bf16.msra.mxu0 0
    %1923 = vmatprep.subr.bf16.mxu0 0
    %1924 = vmatpush2.bf16.msra.mxu0 0
    %1925 = vmatprep.subr.bf16.mxu0 0
    %1926 = vmatpush2.bf16.msra.mxu0 0
    %1927 = vmatprep.subr.bf16.mxu0 0
    %1928 = vmatpush2.bf16.msra.mxu0 0
    %1929 = vmatprep.subr.bf16.mxu0 0
    %1930 = vmatpush2.bf16.msra.mxu0 0
    %1931 = vmatprep.mubr.bf16.mxu0 0
    %1932 = vmatmul.mubr.bf16.gmra.mxu0 %v1897
    %v1933 = vpop.f32.mrf.mxu0
    %v1934 = vadd.f32 %v1881, %v1933
    %v1935 = vpop.f32.mrf.mxu0
    %v1936 = vpop.f32.mrf.mxu0
    %v1937 = vpop.f32.mrf.mxu0
    %1938 = vdwg.mxu0
    %v1939 = vmax.f32 %v1934, 0.0
    %v1940 = vpack.c.bf16 %v1939, %v1939
    %v1941 = vld [vmem:[%s23] sm:$0xf]
    %v1942 = vld [vmem:[%s23 + $0x4] sm:$0xf]
    %v1943 = vld [vmem:[%s23 + $0x8] sm:$0xf]
    %v1944 = vld [vmem:[%s23 + $0xc] sm:$0xf]
    %v1945 = vld [vmem:[#allocation2] sm:$0x1]
    %v1947 = vlaneseq
    %v1948 = vshrl.u32 %v1947, 7
    %v1949 = vsub.s32 0, %v1948
    %v1950 = vrot.slane %v1945, %v1949
    %v1956 = vunpack.c.l.b16 %v1941
    %v1957 = vunpack.c.l.b16 %v1942
    %v1958 = vunpack.c.l.b16 %v1943
    %v1959 = vunpack.c.l.b16 %v1944
    %v1960 = vpack.c.b16 %v1957, %v1956
    %v1961 = vpack.c.b16 %v1959, %v1958
    %v1965 = vsel %vm1895, %v1940, 0
    %1967 = vmatprep.subr.bf16.mxu0 0
    %1968 = vmatpush1.bf16.msra.mxu0 0
    %1969 = vmatprep.subr.bf16.mxu0 0
    %1970 = vmatpush1.bf16.msra.mxu0 0
    %1971 = vmatprep.subr.bf16.mxu0 0
    %1972 = vmatpush1.bf16.msra.mxu0 0
    %1973 = vmatprep.subr.bf16.mxu0 0
    %1974 = vmatpush1.bf16.msra.mxu0 0
    %1975 = vmatprep.subr.bf16.mxu0 0
    %1976 = vmatpush1.bf16.msra.mxu0 0
    %1977 = vmatprep.subr.bf16.mxu0 0
    %1978 = vmatpush1.bf16.msra.mxu0 0
    %1979 = vmatprep.subr.bf16.mxu0 0
    %1980 = vmatpush1.bf16.msra.mxu0 %v1961
    %1981 = vmatprep.subr.bf16.mxu0 0
    %1982 = vmatpush1.bf16.msra.mxu0 %v1960
    %1983 = vmatprep.subr.bf16.mxu0 0
    %1984 = vmatpush2.bf16.msra.mxu0 0
    %1985 = vmatprep.subr.bf16.mxu0 0
    %1986 = vmatpush2.bf16.msra.mxu0 0
    %1987 = vmatprep.subr.bf16.mxu0 0
    %1988 = vmatpush2.bf16.msra.mxu0 0
    %1989 = vmatprep.subr.bf16.mxu0 0
    %1990 = vmatpush2.bf16.msra.mxu0 0
    %1991 = vmatprep.subr.bf16.mxu0 0
    %1992 = vmatpush2.bf16.msra.mxu0 0
    %1993 = vmatprep.subr.bf16.mxu0 0
    %1994 = vmatpush2.bf16.msra.mxu0 0
    %1995 = vmatprep.subr.bf16.mxu0 0
    %1996 = vmatpush2.bf16.msra.mxu0 0
    %1997 = vmatprep.subr.bf16.mxu0 0
    %1998 = vmatpush2.bf16.msra.mxu0 0
    %1999 = vmatprep.mubr.bf16.mxu0 0
    %2000 = vmatmul.mubr.bf16.gmra.mxu0 %v1965
    %v2001 = vpop.f32.mrf.mxu0
    %v2002 = vadd.f32 %v1950, %v2001
    %v2003 = vpop.f32.mrf.mxu0
    %v2004 = vpop.f32.mrf.mxu0
    %v2005 = vpop.f32.mrf.mxu0
    %2006 = vdwg.mxu0
    %v2007 = vlaneseq
    %v2008 = vand.u32 %v2007, 127
    %vm2009 = vcmp.eq.s32.totalorder %v2008, 0
    %2011 = vset.pattern.permute.xlu0 0
    %2012 = vperm.xlu0 %2011, %v2002
    %v2013 = vpop.permute.xlu0 %2012
    %2016 = vset.pattern.permute.xlu0 64
    %2017 = vperm.xlu0 %2016, %v1678
    %v2018 = vpop.permute.xlu0 %2017
    %v2020 = vsel %vm2009, %v2013, %v2018
    %vm2021 = vcmask 9216
    %2022 = vst.msk [vmem:[%s25] sm:$0x3] %vm2021, %v2020
    // Predicated region
    $region126: #{neural_net_forward.1} parent=1 // pred_check
      _
    $region127: #{neural_net_forward.1} parent=1 // pred_check_branch
      %2024 = sbr.rel (0) target = $region129
    $region128: #{neural_net_forward.1} parent=1 // pred_region
      _
    $region129: #{neural_net_forward.1} parent=1 // pred_fallthru
      _
    // Predicated region
    $region130: #{neural_net_forward.1} parent=1 // pred_check
      _
    $region131: #{neural_net_forward.1} parent=1 // pred_check_branch
      %2026 = sbr.rel (0) target = $region133
    $region132: #{neural_net_forward.1} parent=1 // pred_region
      _
    $region133: #{neural_net_forward.1} parent=1 // pred_fallthru
      _
    %2027 = vsyncpa [#allocation4], 1
    %2028 = vsyncpa [#allocation6], 1
    %2029 = vsyncpa [#allocation9], 1
    %2030 = vsyncpa [#allocation12], 1

</llo_original>
